<compile_context>
chip_gen: v7x
topology: tpu7x:2x2x1
jax: 0.10.0
libtpu: 0.0.40
codegen_flags: <defaults>
</compile_context>

<pallas_src>
import numpy as np
import jax
import jax.numpy as jnp
from jax.experimental import pallas as pl
from jax.experimental.pallas import tpu as pltpu


def _grouped_mlp_kernel(
    # scalar-prefetch refs (SMEM)
    tile_ids_ref, expert_ids_ref, grp_start_ref, grp_end_ref, first_ref,
    # inputs (VMEM blocks)
    x_ref, w_gate_ref, w_up_ref, w_down_ref,
    # output
    o_ref,
    # scratch
    acc_ref,
):
    v = pl.program_id(0)   # visit index: one (row-tile, expert) pair
    c = pl.program_id(1)   # chunk of the intermediate dimension I
    nc = pl.num_programs(1)

    @pl.when(c == 0)
    def _():
        acc_ref[...] = jnp.zeros_like(acc_ref)

    x = x_ref[...]                                                     # (TM, H) bf16
    # First grouped GEMM, one I-chunk of the gate and up columns. Keep the f32 MXU
    # accumulators (no bf16 round trip) and fuse silu(gate) * up on the VPU/EUP.
    gate = jnp.dot(x, w_gate_ref[...], preferred_element_type=jnp.float32)
    up = jnp.dot(x, w_up_ref[...], preferred_element_type=jnp.float32)
    h = (gate * jax.nn.sigmoid(gate) * up).astype(x.dtype)             # (TM, BI) bf16
    # Second grouped GEMM: accumulate this I-chunk's contribution in f32.
    acc_ref[...] += jnp.dot(h, w_down_ref[...], preferred_element_type=jnp.float32)

    @pl.when(c == nc - 1)
    def _():
        tm = o_ref.shape[0]
        row0 = tile_ids_ref[v] * tm
        rows = row0 + jax.lax.broadcasted_iota(jnp.int32, (tm, 1), 0)
        valid = (rows >= grp_start_ref[v]) & (rows < grp_end_ref[v])   # (TM, 1)
        result = acc_ref[...].astype(o_ref.dtype)

        @pl.when(first_ref[v] == 1)
        def _():
            # First visit of this row tile: fully define the block (invalid rows -> 0;
            # they are either another expert's rows, overwritten by the next visit, or
            # end-of-array padding that gets sliced off in the wrapper).
            o_ref[...] = jnp.where(valid, result, jnp.zeros_like(result))

        @pl.when(first_ref[v] == 0)
        def _():
            # Later visit of a boundary tile: keep rows written by the earlier expert.
            # The output block index is unchanged, so it is still resident in VMEM.
            o_ref[...] = jnp.where(valid, result, o_ref[...])


def grouped_mlp(hidden_states, w_gate_up, w_down, num_tokens_per_expert,
                tm=256, block_i=512):
    """Grouped MoE MLP forward.

    hidden_states:          [total_tokens, H] bf16 (expert-permuted)
    w_gate_up:              [E, H, 2I] bf16
    w_down:                 [E, I, H]  bf16
    num_tokens_per_expert:  host-side sequence of E ints (module moves it to CPU too)
    tm:                     row tile (128 on v5e, 256 on v6e/v7x are good choices)
    block_i:                chunk width of the intermediate dimension I
    """
    counts = [int(c) for c in np.asarray(num_tokens_per_expert)]
    E, H, two_i = w_gate_up.shape
    inter = two_i // 2
    total = int(hidden_states.shape[0])
    assert sum(counts) == total
    dtype = hidden_states.dtype

    if total == 0:
        return {"hidden_states": jnp.zeros((0, H), dtype)}

    # Chunk the intermediate dimension so per-step weight blocks double-buffer in VMEM
    # (v7x has only 64 MiB per TensorCore).
    bi = min(block_i, inter)
    if inter % bi != 0:
        bi = inter  # TODO(synk): pad/mask the intermediate dim when no clean divisor exists
    nci = inter // bi

    num_tiles = -(-total // tm)
    total_padded = num_tiles * tm
    x = hidden_states
    if total_padded != total:
        # Only the final tile is padded (< tm rows). No per-expert scatter/gather.
        x = jnp.pad(hidden_states, ((0, total_padded - total), (0, 0)))

    # Host-side visit table (counts live on CPU per the module's contract): one visit per
    # (row-tile, expert) intersection; boundary tiles straddling two experts get 2 visits.
    offsets = np.concatenate([[0], np.cumsum(np.array(counts, dtype=np.int64))])
    tiles, experts, starts, ends, firsts = [], [], [], [], []
    for t in range(num_tiles):
        r0, r1 = t * tm, (t + 1) * tm
        first = 1
        for e in range(E):
            s, en = int(offsets[e]), int(offsets[e + 1])
            if en <= s or en <= r0 or s >= r1:
                continue
            tiles.append(t)
            experts.append(e)
            starts.append(s)
            ends.append(en)
            firsts.append(first)
            first = 0
    num_visits = len(tiles)

    tile_ids = jnp.asarray(np.array(tiles, dtype=np.int32))
    expert_ids = jnp.asarray(np.array(experts, dtype=np.int32))
    grp_starts = jnp.asarray(np.array(starts, dtype=np.int32))
    grp_ends = jnp.asarray(np.array(ends, dtype=np.int32))
    first_flags = jnp.asarray(np.array(firsts, dtype=np.int32))

    grid_spec = pltpu.PrefetchScalarGridSpec(
        num_scalar_prefetch=5,
        grid=(num_visits, nci),
        in_specs=[
            # token tile (same block across the I-chunk axis -> fetched once per visit)
            pl.BlockSpec((tm, H), lambda v, c, ti, ei, gs, ge, fi: (ti[v], 0)),
            # gate column chunk of merged_gate_up_proj: columns [c*bi, (c+1)*bi)
            pl.BlockSpec((pl.Squeezed(), H, bi),
                         lambda v, c, ti, ei, gs, ge, fi: (ei[v], 0, c)),
            # up column chunk: columns [I + c*bi, I + (c+1)*bi)  (block index offset nci)
            pl.BlockSpec((pl.Squeezed(), H, bi),
                         lambda v, c, ti, ei, gs, ge, fi: (ei[v], 0, nci + c)),
            # matching rows of merged_down_proj
            pl.BlockSpec((pl.Squeezed(), bi, H),
                         lambda v, c, ti, ei, gs, ge, fi: (ei[v], c, 0)),
        ],
        out_specs=pl.BlockSpec((tm, H), lambda v, c, ti, ei, gs, ge, fi: (ti[v], 0)),
        scratch_shapes=[pltpu.VMEM((tm, H), jnp.float32)],
    )

    # VMEM budget: double-buffered x / gate / up / down / out blocks + f32 accumulator.
    bpe = jnp.dtype(dtype).itemsize
    needed = 2 * (tm * H * bpe + 2 * (H * bi * bpe) + bi * H * bpe + tm * H * bpe) \
        + tm * H * 4
    vmem_limit = int(min(max(needed + (4 << 20), 32 << 20), 128 << 20))

    active_experts = sum(1 for c in counts if c > 0)
    cost = pl.CostEstimate(
        flops=2 * total * H * two_i + 2 * total * inter * H,
        transcendentals=total * inter,
        bytes_accessed=2 * total * H * bpe
        + active_experts * (H * two_i + inter * H) * bpe,
    )

    out_padded = pl.pallas_call(
        _grouped_mlp_kernel,
        out_shape=jax.ShapeDtypeStruct((total_padded, H), dtype),
        grid_spec=grid_spec,
        compiler_params=pltpu.CompilerParams(
            # The visit axis must stay "arbitrary": consecutive visits of a boundary tile
            # share (and read back) the resident output block; the I-chunk axis is a
            # reduction into the accumulator.
            # TODO(synk): for v7x megacore, shard whole row-tiles per core explicitly
            # instead of relying on "parallel" here.
            dimension_semantics=("arbitrary", "arbitrary"),
            vmem_limit_bytes=vmem_limit,
        ),
        cost_estimate=cost,
    )(tile_ids, expert_ids, grp_starts, grp_ends, first_flags,
      x, w_gate_up, w_gate_up, w_down)

    # Rows come back in the original permuted order; drop end-of-array padding only.
    return {"hidden_states": out_padded[:total]}


def _reference(hidden_states, w_gate_up, w_down, counts):
    """Pure-JAX reference matching the kernel's casting points.

    Note: grouped_gemm's first gmm returns bf16 (an extra intermediate rounding); per the
    perf review the kernel keeps the f32 accumulator through the activation instead, so
    the reference does the same. Differences are within the loose bf16 tolerance.
    """
    outs, off = [], 0
    for e, c in enumerate(counts):
        xe = hidden_states[off: off + c]
        merged = jnp.dot(xe, w_gate_up[e], preferred_element_type=jnp.float32)
        gate, up = jnp.split(merged, 2, axis=-1)
        h = (gate * jax.nn.sigmoid(gate) * up).astype(hidden_states.dtype)
        o = jnp.dot(h, w_down[e], preferred_element_type=jnp.float32)
        outs.append(o.astype(hidden_states.dtype))
        off += c
    return jnp.concatenate(outs, axis=0)


if __name__ == "__main__":
    # Small synthetic config: 4 local experts, hidden_size=256, moe_intermediate_size=256.
    # Counts chosen so some row tiles straddle expert boundaries and one expert is empty.
    E, H, I = 4, 256, 256
    num_tokens_per_expert = [100, 173, 0, 211]
    T = sum(num_tokens_per_expert)

    key = jax.random.PRNGKey(0)
    k_x, k_w1, k_w2 = jax.random.split(key, 3)
    w_gate_up = jax.random.normal(k_w1, (E, H, 2 * I), dtype=jnp.float32).astype(jnp.bfloat16)
    w_down = jax.random.normal(k_w2, (E, I, H), dtype=jnp.float32).astype(jnp.bfloat16)
    hidden_states = jax.random.normal(k_x, (T, H), dtype=jnp.float32).astype(jnp.bfloat16)

    # tm=128 / block_i=128 keep the toy problem multi-tile and multi-chunk; real configs
    # would use the defaults (tm=256, block_i=512).
    out = grouped_mlp(hidden_states, w_gate_up, w_down, num_tokens_per_expert,
                      tm=128, block_i=128)["hidden_states"]
    out = jax.block_until_ready(out)

    ref = _reference(hidden_states, w_gate_up, w_down, num_tokens_per_expert)
    np.testing.assert_allclose(
        np.asarray(out, dtype=np.float32),
        np.asarray(ref, dtype=np.float32),
        rtol=5e-2,
        atol=8.0,
    )
    assert out.shape == (T, H) and out.dtype == jnp.bfloat16
    print("KERNEL_OK")
</pallas_src>

<mosaic_0001>
module attributes {stable_mosaic.version = 11 : i64} {
  func.func @_grouped_mlp_kernel(%arg0: i32, %arg1: i32, %arg2: memref<6xi32, #tpu.memory_space<smem>>, %arg3: memref<6xi32, #tpu.memory_space<smem>>, %arg4: memref<6xi32, #tpu.memory_space<smem>>, %arg5: memref<6xi32, #tpu.memory_space<smem>>, %arg6: memref<6xi32, #tpu.memory_space<smem>>, %arg7: memref<128x256xbf16, #tpu.memory_space<vmem>>, %arg8: memref<1x256x128xbf16, #tpu.memory_space<vmem>>, %arg9: memref<1x256x128xbf16, #tpu.memory_space<vmem>>, %arg10: memref<1x128x256xbf16, #tpu.memory_space<vmem>>, %arg11: memref<128x256xbf16, #tpu.memory_space<vmem>>, %arg12: memref<128x256xf32, #tpu.memory_space<vmem>>) attributes {dimension_semantics = [#tpu.dimension_semantics<arbitrary>, #tpu.dimension_semantics<arbitrary>], iteration_bounds = array<i64: 6, 2>, scalar_prefetch = 5 : i64, scratch_operands = 1 : i64, tpu.core_type = #tpu.core_type<tc>, window_params = [{transform_indices = @transform_0, window_bounds = array<i64: 128, 256>}, {transform_indices = @transform_1, window_bounds = array<i64: 1, 256, 128>}, {transform_indices = @transform_2, window_bounds = array<i64: 1, 256, 128>}, {transform_indices = @transform_3, window_bounds = array<i64: 1, 128, 256>}, {transform_indices = @transform_4, window_bounds = array<i64: 128, 256>}]} {
    %c0_i32 = arith.constant 0 : i32
    %0 = arith.cmpi eq, %arg1, %c0_i32 : i32
    %1 = arith.extui %0 : i1 to i32
    %c0_i32_0 = arith.constant 0 : i32
    %2 = arith.cmpi ne, %1, %c0_i32_0 : i32
    scf.if %2 {
      %cst_19 = arith.constant 0.000000e+00 : f32
      %27 = vector.broadcast %cst_19 : f32 to vector<128x256xf32>
      %c0_20 = arith.constant 0 : index
      %c0_21 = arith.constant 0 : index
      %28 = vector.load %arg12[%c0_20, %c0_21] : memref<128x256xf32, #tpu.memory_space<vmem>>, vector<128x256xf32>
      tpu.vector_store %arg12[%c0_20, %c0_21], %27 {strides = array<i32>} : memref<128x256xf32, #tpu.memory_space<vmem>>, vector<128x256xf32>,
    } else {
    }
    %c0 = arith.constant 0 : index
    %c0_1 = arith.constant 0 : index
    %3 = vector.load %arg7[%c0, %c0_1] : memref<128x256xbf16, #tpu.memory_space<vmem>>, vector<128x256xbf16>
    %c0_2 = arith.constant 0 : index
    %c0_3 = arith.constant 0 : index
    %c0_4 = arith.constant 0 : index
    %4 = vector.load %arg8[%c0_2, %c0_3, %c0_4] : memref<1x256x128xbf16, #tpu.memory_space<vmem>>, vector<1x256x128xbf16>
    %5 = vector.shape_cast %4 : vector<1x256x128xbf16> to vector<256x128xbf16>
    %cst = arith.constant dense<0.000000e+00> : vector<128x128xf32>
    %6 = tpu.matmul %3, %5, %cst {dimension_numbers = #tpu.dot_dimension_numbers<[1], [0], [0], [1], [0, 0, 1, 1], [], []>} : vector<128x256xbf16>, vector<256x128xbf16>, vector<128x128xf32> -> vector<128x128xf32>
    %c0_5 = arith.constant 0 : index
    %c0_6 = arith.constant 0 : index
    %c0_7 = arith.constant 0 : index
    %7 = vector.load %arg9[%c0_5, %c0_6, %c0_7] : memref<1x256x128xbf16, #tpu.memory_space<vmem>>, vector<1x256x128xbf16>
    %8 = vector.shape_cast %7 : vector<1x256x128xbf16> to vector<256x128xbf16>
    %cst_8 = arith.constant dense<0.000000e+00> : vector<128x128xf32>
    %9 = tpu.matmul %3, %8, %cst_8 {dimension_numbers = #tpu.dot_dimension_numbers<[1], [0], [0], [1], [0, 0, 1, 1], [], []>} : vector<128x256xbf16>, vector<256x128xbf16>, vector<128x128xf32> -> vector<128x128xf32>
    %10 = arith.negf %6 : vector<128x128xf32>
    %11 = math.exp %10 : vector<128x128xf32>
    %cst_9 = arith.constant 1.000000e+00 : f32
    %12 = vector.broadcast %cst_9 : f32 to vector<128x128xf32>
    %13 = arith.addf %12, %11 : vector<128x128xf32>
    %14 = arith.divf %12, %13 : vector<128x128xf32>
    %15 = arith.mulf %6, %14 : vector<128x128xf32>
    %16 = arith.mulf %15, %9 : vector<128x128xf32>
    %17 = arith.truncf %16 : vector<128x128xf32> to vector<128x128xbf16>
    %c0_10 = arith.constant 0 : index
    %c0_11 = arith.constant 0 : index
    %18 = vector.load %arg12[%c0_10, %c0_11] : memref<128x256xf32, #tpu.memory_space<vmem>>, vector<128x256xf32>
    %c0_12 = arith.constant 0 : index
    %c0_13 = arith.constant 0 : index
    %c0_14 = arith.constant 0 : index
    %19 = vector.load %arg10[%c0_12, %c0_13, %c0_14] : memref<1x128x256xbf16, #tpu.memory_space<vmem>>, vector<1x128x256xbf16>
    %20 = vector.shape_cast %19 : vector<1x128x256xbf16> to vector<128x256xbf16>
    %cst_15 = arith.constant dense<0.000000e+00> : vector<128x256xf32>
    %21 = tpu.matmul %17, %20, %cst_15 {dimension_numbers = #tpu.dot_dimension_numbers<[1], [0], [0], [1], [0, 0, 1, 1], [], []>} : vector<128x128xbf16>, vector<128x256xbf16>, vector<128x256xf32> -> vector<128x256xf32>
    %22 = arith.addf %18, %21 : vector<128x256xf32>
    %c0_16 = arith.constant 0 : index
    %c0_17 = arith.constant 0 : index
    %23 = vector.load %arg12[%c0_16, %c0_17] : memref<128x256xf32, #tpu.memory_space<vmem>>, vector<128x256xf32>
    tpu.vector_store %arg12[%c0_16, %c0_17], %22 {strides = array<i32>} : memref<128x256xf32, #tpu.memory_space<vmem>>, vector<128x256xf32>,
    %c1_i32 = arith.constant 1 : i32
    %24 = arith.cmpi eq, %arg1, %c1_i32 : i32
    %25 = arith.extui %24 : i1 to i32
    %c0_i32_18 = arith.constant 0 : i32
    %26 = arith.cmpi ne, %25, %c0_i32_18 : i32
    scf.if %26 {
      %27 = arith.index_cast %arg0 : i32 to index
      %28 = memref.load %arg2[%27] : memref<6xi32, #tpu.memory_space<smem>>
      %c128_i32 = arith.constant 128 : i32
      %29 = arith.muli %28, %c128_i32 : i32
      %30 = tpu.iota {dimensions = array<i32: 0>} : vector<128x1xi32>
      %31 = vector.broadcast %29 : i32 to vector<128x1xi32>
      %32 = arith.addi %31, %30 : vector<128x1xi32>
      %33 = arith.index_cast %arg0 : i32 to index
      %34 = memref.load %arg4[%33] : memref<6xi32, #tpu.memory_space<smem>>
      %35 = vector.broadcast %34 : i32 to vector<128x1xi32>
      %36 = arith.cmpi sge, %32, %35 : vector<128x1xi32>
      %37 = arith.index_cast %arg0 : i32 to index
      %38 = memref.load %arg5[%37] : memref<6xi32, #tpu.memory_space<smem>>
      %39 = vector.broadcast %38 : i32 to vector<128x1xi32>
      %40 = arith.cmpi slt, %32, %39 : vector<128x1xi32>
      %41 = arith.andi %36, %40 : vector<128x1xi1>
      %c0_19 = arith.constant 0 : index
      %c0_20 = arith.constant 0 : index
      %42 = vector.load %arg12[%c0_19, %c0_20] : memref<128x256xf32, #tpu.memory_space<vmem>>, vector<128x256xf32>
      %43 = arith.truncf %42 : vector<128x256xf32> to vector<128x256xbf16>
      %44 = arith.index_cast %arg0 : i32 to index
      %45 = memref.load %arg6[%44] : memref<6xi32, #tpu.memory_space<smem>>
      %c1_i32_21 = arith.constant 1 : i32
      %46 = arith.cmpi eq, %45, %c1_i32_21 : i32
      %47 = arith.extui %46 : i1 to i32
      %c0_i32_22 = arith.constant 0 : i32
      %48 = arith.cmpi ne, %47, %c0_i32_22 : i32
      scf.if %48 {
        %cst_25 = arith.constant 0.000000e+00 : bf16
        %54 = vector.broadcast %cst_25 : bf16 to vector<128x256xbf16>
        %55 = vector.shape_cast %41 : vector<128x1xi1> to vector<128x1xi1>
        %56 = vector.broadcast %55 : vector<128x1xi1> to vector<128x256xi1>
        %57 = arith.select %56, %43, %54 : vector<128x256xi1>, vector<128x256xbf16>
        %c0_26 = arith.constant 0 : index
        %c0_27 = arith.constant 0 : index
        %58 = vector.load %arg11[%c0_26, %c0_27] : memref<128x256xbf16, #tpu.memory_space<vmem>>, vector<128x256xbf16>
        tpu.vector_store %arg11[%c0_26, %c0_27], %57 {strides = array<i32>} : memref<128x256xbf16, #tpu.memory_space<vmem>>, vector<128x256xbf16>,
      } else {
      }
      %49 = arith.index_cast %arg0 : i32 to index
      %50 = memref.load %arg6[%49] : memref<6xi32, #tpu.memory_space<smem>>
      %c0_i32_23 = arith.constant 0 : i32
      %51 = arith.cmpi eq, %50, %c0_i32_23 : i32
      %52 = arith.extui %51 : i1 to i32
      %c0_i32_24 = arith.constant 0 : i32
      %53 = arith.cmpi ne, %52, %c0_i32_24 : i32
      scf.if %53 {
        %c0_25 = arith.constant 0 : index
        %c0_26 = arith.constant 0 : index
        %54 = vector.load %arg11[%c0_25, %c0_26] : memref<128x256xbf16, #tpu.memory_space<vmem>>, vector<128x256xbf16>
        %55 = vector.shape_cast %41 : vector<128x1xi1> to vector<128x1xi1>
        %56 = vector.broadcast %55 : vector<128x1xi1> to vector<128x256xi1>
        %57 = arith.select %56, %43, %54 : vector<128x256xi1>, vector<128x256xbf16>
        %c0_27 = arith.constant 0 : index
        %c0_28 = arith.constant 0 : index
        %58 = vector.load %arg11[%c0_27, %c0_28] : memref<128x256xbf16, #tpu.memory_space<vmem>>, vector<128x256xbf16>
        tpu.vector_store %arg11[%c0_27, %c0_28], %57 {strides = array<i32>} : memref<128x256xbf16, #tpu.memory_space<vmem>>, vector<128x256xbf16>,
      } else {
      }
    } else {
    }
    return
  }
  func.func @transform_0(%arg0: i32, %arg1: i32, %arg2: memref<6xi32, #tpu.memory_space<smem>>, %arg3: memref<6xi32, #tpu.memory_space<smem>>, %arg4: memref<6xi32, #tpu.memory_space<smem>>, %arg5: memref<6xi32, #tpu.memory_space<smem>>, %arg6: memref<6xi32, #tpu.memory_space<smem>>) -> (i32, i32) {
    %0 = arith.index_cast %arg0 : i32 to index
    %1 = memref.load %arg2[%0] : memref<6xi32, #tpu.memory_space<smem>>
    %c0_i32 = arith.constant 0 : i32
    %c0_i32_0 = arith.constant 0 : i32
    return %1, %c0_i32 : i32, i32
  }
  func.func @transform_1(%arg0: i32, %arg1: i32, %arg2: memref<6xi32, #tpu.memory_space<smem>>, %arg3: memref<6xi32, #tpu.memory_space<smem>>, %arg4: memref<6xi32, #tpu.memory_space<smem>>, %arg5: memref<6xi32, #tpu.memory_space<smem>>, %arg6: memref<6xi32, #tpu.memory_space<smem>>) -> (i32, i32, i32) {
    %0 = arith.index_cast %arg0 : i32 to index
    %1 = memref.load %arg3[%0] : memref<6xi32, #tpu.memory_space<smem>>
    %c0_i32 = arith.constant 0 : i32
    %c0_i32_0 = arith.constant 0 : i32
    return %1, %c0_i32, %arg1 : i32, i32, i32
  }
  func.func @transform_2(%arg0: i32, %arg1: i32, %arg2: memref<6xi32, #tpu.memory_space<smem>>, %arg3: memref<6xi32, #tpu.memory_space<smem>>, %arg4: memref<6xi32, #tpu.memory_space<smem>>, %arg5: memref<6xi32, #tpu.memory_space<smem>>, %arg6: memref<6xi32, #tpu.memory_space<smem>>) -> (i32, i32, i32) {
    %0 = arith.index_cast %arg0 : i32 to index
    %1 = memref.load %arg3[%0] : memref<6xi32, #tpu.memory_space<smem>>
    %c2_i32 = arith.constant 2 : i32
    %2 = arith.addi %c2_i32, %arg1 : i32
    %c0_i32 = arith.constant 0 : i32
    %c0_i32_0 = arith.constant 0 : i32
    return %1, %c0_i32, %2 : i32, i32, i32
  }
  func.func @transform_3(%arg0: i32, %arg1: i32, %arg2: memref<6xi32, #tpu.memory_space<smem>>, %arg3: memref<6xi32, #tpu.memory_space<smem>>, %arg4: memref<6xi32, #tpu.memory_space<smem>>, %arg5: memref<6xi32, #tpu.memory_space<smem>>, %arg6: memref<6xi32, #tpu.memory_space<smem>>) -> (i32, i32, i32) {
    %0 = arith.index_cast %arg0 : i32 to index
    %1 = memref.load %arg3[%0] : memref<6xi32, #tpu.memory_space<smem>>
    %c0_i32 = arith.constant 0 : i32
    %c0_i32_0 = arith.constant 0 : i32
    return %1, %arg1, %c0_i32 : i32, i32, i32
  }
  func.func @transform_4(%arg0: i32, %arg1: i32, %arg2: memref<6xi32, #tpu.memory_space<smem>>, %arg3: memref<6xi32, #tpu.memory_space<smem>>, %arg4: memref<6xi32, #tpu.memory_space<smem>>, %arg5: memref<6xi32, #tpu.memory_space<smem>>, %arg6: memref<6xi32, #tpu.memory_space<smem>>) -> (i32, i32) {
    %0 = arith.index_cast %arg0 : i32 to index
    %1 = memref.load %arg2[%0] : memref<6xi32, #tpu.memory_space<smem>>
    %c0_i32 = arith.constant 0 : i32
    %c0_i32_0 = arith.constant 0 : i32
    return %1, %c0_i32 : i32, i32
  }
}

</mosaic_0001>

<llo_original>
// kernel: tpu_custom_call.1
$region0: #{tpu_custom_call.1}
  #allocation0 [shape = 'u32[]', space=smem, size = 0x4, offset = 0x4, fixed_abs, tag = 'smem constant byte address 0x4 - core index']
  #allocation1 [shape = 'u32[144,128]{1,0:T(1,128)}', space=vmem, size = 0x12000, scoped, tag = 'internal scratch']
  #allocation2 [shape = 'f32[128,256]{1,0:T(8,128)}', space=vmem, size = 0x20000, scoped, tag = 'scratch operand']
  #allocation3 [shape = 's32[1]{0}', space=sflag, size = 0x4, scoped, tag = 'scoped memory for tpu_custom_call.1']
  #allocation4 [shape = 'u8[512]{0}', space=smem, size = 0x200, scoped, tag = 'prefetched SMEM operand 0']
  #allocation5 [shape = 'u8[512]{0}', space=smem, size = 0x200, scoped, tag = 'prefetched SMEM operand 1']
  #allocation6 [shape = 'u8[512]{0}', space=smem, size = 0x200, scoped, tag = 'prefetched SMEM operand 2']
  #allocation7 [shape = 'u8[512]{0}', space=smem, size = 0x200, scoped, tag = 'prefetched SMEM operand 3']
  #allocation8 [shape = 'u8[512]{0}', space=smem, size = 0x200, scoped, tag = 'prefetched SMEM operand 4']
  %s0 = inlined_call_operand.hbm [shape: s32[6], index: 0, kind: input, shape index: {}]
  %s1 = inlined_call_operand.vmem [shape: s32[6], index: 1, kind: input, shape index: {}]
  %s2 = inlined_call_operand.vmem [shape: s32[6], index: 2, kind: input, shape index: {}]
  %s3 = inlined_call_operand.vmem [shape: s32[6], index: 3, kind: input, shape index: {}]
  %s4 = inlined_call_operand.vmem [shape: s32[6], index: 4, kind: input, shape index: {}]
  %s5 = inlined_call_operand.hbm [shape: bf16[512,256], index: 5, kind: input, shape index: {}]
  %s6 = inlined_call_operand.hbm [shape: bf16[4,256,512], index: 6, kind: input, shape index: {}]
  %s7 = inlined_call_operand.hbm [shape: bf16[4,256,512], index: 7, kind: input, shape index: {}]
  %s8 = inlined_call_operand.hbm [shape: bf16[4,256,256], index: 8, kind: input, shape index: {}]
  %s9 = inlined_call_operand.hbm [shape: bf16[512,256], index: 9, kind: output, shape index: {}]
  %s10 = sld [smem:[#allocation0]]
  $region81: #{tpu_custom_call.1} parent=0
    _
  %s12 = ssub.s32 1, %s10
  %s13 = scalar_select 0, %s12, %s10
  %15 = dma.hbm_to_smem %s0, 16, [#allocation4], [#allocation3]
  %s16 = sshll.u32 %s1, 4
  %s17 = int_to_ptr.vmem [resolvable:$true] %s16
  %19 = dma.vmem_to_smem %s17, 16, [#allocation5], [#allocation3]
  %s20 = sshll.u32 %s2, 4
  %s21 = int_to_ptr.vmem [resolvable:$true] %s20
  %23 = dma.vmem_to_smem %s21, 16, [#allocation6], [#allocation3]
  %s24 = sshll.u32 %s3, 4
  %s25 = int_to_ptr.vmem [resolvable:$true] %s24
  %27 = dma.vmem_to_smem %s25, 16, [#allocation7], [#allocation3]
  %s28 = sshll.u32 %s4, 4
  %s29 = int_to_ptr.vmem [resolvable:$true] %s28
  %31 = dma.vmem_to_smem %s29, 16, [#allocation8], [#allocation3]
  %32 = dma.done [#allocation3], 80
  %33 = sfence
  $region1: #{tpu_custom_call.1} parent=0
    #allocation9 [shape = 'u8[131072]{0}', space=vmem, size = 0x20000, scoped, tag = 'input window, operand 5']
    #allocation10 [shape = 's32[2]{0}', space=sflag, size = 0x8, scoped, tag = 'scoped memory for tpu_custom_call.1']
    #allocation11 [shape = 's32[2]{0}', space=sflag, size = 0x8, scoped, tag = 'scoped memory for tpu_custom_call.1']
    #allocation12 [shape = 'u8[131072]{0}', space=vmem, size = 0x20000, scoped, tag = 'input window, operand 6']
    #allocation13 [shape = 's32[2]{0}', space=sflag, size = 0x8, scoped, tag = 'scoped memory for tpu_custom_call.1']
    #allocation14 [shape = 'u8[131072]{0}', space=vmem, size = 0x20000, scoped, tag = 'input window, operand 7']
    #allocation15 [shape = 'u8[131072]{0}', space=vmem, size = 0x20000, scoped, tag = 'input window, operand 8']
    #allocation16 [shape = 's32[2]{0}', space=sflag, size = 0x8, scoped, tag = 'scoped memory for tpu_custom_call.1']
    #allocation17 [shape = 'u8[131072]{0}', space=vmem, size = 0x20000, scoped, tag = 'output window, operand 0']
    %34 = vsyncpa [#allocation10], 0
    %s35 = scalar_lea.sflag [#allocation10], 1
    %36 = vsyncpa %s35, 0
    %37 = vsyncpa [#allocation13], 0
    %s38 = scalar_lea.sflag [#allocation13], 1
    %39 = vsyncpa %s38, 0
    %40 = vsyncpa [#allocation16], 0
    %s41 = scalar_lea.sflag [#allocation16], 1
    %42 = vsyncpa %s41, 0
    %43 = vsyncpa [#allocation11], 0
    %s44 = scalar_lea.sflag [#allocation11], 1
    %45 = vsyncpa %s44, 0
    loop: start=0, step=1, limit=14
    $region2: #{tpu_custom_call.1} parent=1 // loop_pre_header
      _
    $region3: #{tpu_custom_call.1} parent=1 // loop_header
      %s47 = sphi 0, %s51
      %p48 = scmp.ge.s32.totalorder %s47, 14
      %s54 = sphi 0, %s66
      %s55 = sphi 0, %s62
      %s56 = sphi 0, %s54
      %s57 = sphi 0, %s55
      %s58 = sphi 0, %s56
      %s59 = sphi 0, %s57
      %s71 = sphi 0, %s73
      %s74 = sphi 0, %s71
      %s75 = sphi 0, %s74
      %s91 = sphi 0, %s75
      %s101 = sphi 0, %s103
      %s104 = sphi 0, %s101
      %s105 = sphi 0, %s104
      %s121 = sphi 0, %s105
      %s133 = sphi 0, %s135
      %s136 = sphi 0, %s133
      %s137 = sphi 0, %s136
      %s153 = sphi 0, %s137
      %s163 = sphi 0, %s165
      %s166 = sphi 0, %s163
      %s167 = sphi 0, %s166
      %s183 = sphi 0, %s167
      %s191 = sphi 0, %s193
      %s194 = sphi 0, %s191
      %s195 = sphi 0, %s194
      %s211 = sphi 0, %s195
    $region4: #{tpu_custom_call.1} parent=1 // loop_header_branch
      %50 = sbr.rel (%p48) target = $region8
    $region5: #{tpu_custom_call.1} parent=1 // loop_body
      %s52 = ssub.s32 %s47, 1
      %s53 = ssub.s32 %s47, 2
      %s60 = sadd.s32 1, %s55
      %p61 = scmp.ge.s32.totalorder %s60, 2
      %s62 = scalar_select %p61, 0, %s60
      %s63 = sadd.s32 1, %s54
      %s64 = scalar_select %p61, %s63, %s54
      %p65 = scmp.ge.s32.totalorder %s64, 6
      %s66 = scalar_select %p65, 0, %s64
      %s67 = sld [smem:[#allocation4 + %s54]]
      %s68 = sld [smem:[#allocation4 + %s66]]
      %s69 = ssub.s32 %s67, %s68
      %p70 = scmp.eq.s32.totalorder %s69, 0
      %s72 = sadd.s32 %s71, 1
      %s73 = scalar_select %p70, %s71, %s72
      %p76 = pneg %p70
      %p77 = scmp.eq.s32.totalorder %s47, 11
      %p78 = por %p76, %p77
      %p79 = scmp.ne.s32.totalorder %s71, %s74
      %p80 = scmp.eq.s32.totalorder %s47, 0
      %p81 = por %p79, %p80
      %p82 = scmp.ne.s32.totalorder %s71, %s74
      %p83 = scmp.eq.s32.totalorder %s52, 11
      %p84 = por %p82, %p83
      %p85 = scmp.ne.s32.totalorder %s74, %s75
      %p86 = scmp.eq.s32.totalorder %s52, 0
      %p87 = por %p85, %p86
      %p88 = scmp.ne.s32.totalorder %s74, %s75
      %p89 = scmp.eq.s32.totalorder %s53, 11
      %p90 = por %p88, %p89
      %p92 = scmp.ne.s32.totalorder %s75, %s91
      %p93 = scmp.eq.s32.totalorder %s53, 0
      %p94 = por %p92, %p93
      %s95 = sld [smem:[#allocation5 + %s54]]
      %s96 = sld [smem:[#allocation5 + %s66]]
      %s97 = ssub.s32 %s95, %s96
      %s98 = ssub.s32 %s55, %s62
      %s99 = sor.u32 %s97, %s98
      %p100 = scmp.eq.s32.totalorder %s99, 0
      %s102 = sadd.s32 %s101, 1
      %s103 = scalar_select %p100, %s101, %s102
      %p106 = pneg %p100
      %p107 = scmp.eq.s32.totalorder %s47, 11
      %p108 = por %p106, %p107
      %p109 = scmp.ne.s32.totalorder %s101, %s104
      %p110 = scmp.eq.s32.totalorder %s47, 0
      %p111 = por %p109, %p110
      %p112 = scmp.ne.s32.totalorder %s101, %s104
      %p113 = scmp.eq.s32.totalorder %s52, 11
      %p114 = por %p112, %p113
      %p115 = scmp.ne.s32.totalorder %s104, %s105
      %p116 = scmp.eq.s32.totalorder %s52, 0
      %p117 = por %p115, %p116
      %p118 = scmp.ne.s32.totalorder %s104, %s105
      %p119 = scmp.eq.s32.totalorder %s53, 11
      %p120 = por %p118, %p119
      %p122 = scmp.ne.s32.totalorder %s105, %s121
      %p123 = scmp.eq.s32.totalorder %s53, 0
      %p124 = por %p122, %p123
      %s125 = sld [smem:[#allocation5 + %s54]]
      %s126 = sadd.s32 %s55, 2
      %s127 = sld [smem:[#allocation5 + %s66]]
      %s128 = sadd.s32 %s62, 2
      %s129 = ssub.s32 %s125, %s127
      %s130 = ssub.s32 %s126, %s128
      %s131 = sor.u32 %s129, %s130
      %p132 = scmp.eq.s32.totalorder %s131, 0
      %s134 = sadd.s32 %s133, 1
      %s135 = scalar_select %p132, %s133, %s134
      %p138 = pneg %p132
      %p139 = scmp.eq.s32.totalorder %s47, 11
      %p140 = por %p138, %p139
      %p141 = scmp.ne.s32.totalorder %s133, %s136
      %p142 = scmp.eq.s32.totalorder %s47, 0
      %p143 = por %p141, %p142
      %p144 = scmp.ne.s32.totalorder %s133, %s136
      %p145 = scmp.eq.s32.totalorder %s52, 11
      %p146 = por %p144, %p145
      %p147 = scmp.ne.s32.totalorder %s136, %s137
      %p148 = scmp.eq.s32.totalorder %s52, 0
      %p149 = por %p147, %p148
      %p150 = scmp.ne.s32.totalorder %s136, %s137
      %p151 = scmp.eq.s32.totalorder %s53, 11
      %p152 = por %p150, %p151
      %p154 = scmp.ne.s32.totalorder %s137, %s153
      %p155 = scmp.eq.s32.totalorder %s53, 0
      %p156 = por %p154, %p155
      %s157 = sld [smem:[#allocation5 + %s54]]
      %s158 = sld [smem:[#allocation5 + %s66]]
      %s159 = ssub.s32 %s157, %s158
      %s160 = ssub.s32 %s55, %s62
      %s161 = sor.u32 %s159, %s160
      %p162 = scmp.eq.s32.totalorder %s161, 0
      %s164 = sadd.s32 %s163, 1
      %s165 = scalar_select %p162, %s163, %s164
      %p168 = pneg %p162
      %p169 = scmp.eq.s32.totalorder %s47, 11
      %p170 = por %p168, %p169
      %p171 = scmp.ne.s32.totalorder %s163, %s166
      %p172 = scmp.eq.s32.totalorder %s47, 0
      %p173 = por %p171, %p172
      %p174 = scmp.ne.s32.totalorder %s163, %s166
      %p175 = scmp.eq.s32.totalorder %s52, 11
      %p176 = por %p174, %p175
      %p177 = scmp.ne.s32.totalorder %s166, %s167
      %p178 = scmp.eq.s32.totalorder %s52, 0
      %p179 = por %p177, %p178
      %p180 = scmp.ne.s32.totalorder %s166, %s167
      %p181 = scmp.eq.s32.totalorder %s53, 11
      %p182 = por %p180, %p181
      %p184 = scmp.ne.s32.totalorder %s167, %s183
      %p185 = scmp.eq.s32.totalorder %s53, 0
      %p186 = por %p184, %p185
      %s187 = sld [smem:[#allocation4 + %s54]]
      %s188 = sld [smem:[#allocation4 + %s66]]
      %s189 = ssub.s32 %s187, %s188
      %p190 = scmp.eq.s32.totalorder %s189, 0
      %s192 = sadd.s32 %s191, 1
      %s193 = scalar_select %p190, %s191, %s192
      %p196 = pneg %p190
      %p197 = scmp.eq.s32.totalorder %s47, 11
      %p198 = por %p196, %p197
      %p199 = scmp.ne.s32.totalorder %s191, %s194
      %p200 = scmp.eq.s32.totalorder %s47, 0
      %p201 = por %p199, %p200
      %p202 = scmp.ne.s32.totalorder %s191, %s194
      %p203 = scmp.eq.s32.totalorder %s52, 11
      %p204 = por %p202, %p203
      %p205 = scmp.ne.s32.totalorder %s194, %s195
      %p206 = scmp.eq.s32.totalorder %s52, 0
      %p207 = por %p205, %p206
      %p208 = scmp.ne.s32.totalorder %s194, %s195
      %p209 = scmp.eq.s32.totalorder %s53, 11
      %p210 = por %p208, %p209
      %p212 = scmp.ne.s32.totalorder %s195, %s211
      %p213 = scmp.eq.s32.totalorder %s53, 0
      %p214 = por %p212, %p213
      %p215 = scmp.le.s32.totalorder 1, %s47
      %p216 = scmp.lt.s32.totalorder %s47, 13
      %p217 = pnand %p215, %p216
      %p218 = pneg %p217
      // Predicated region
      $region9: #{tpu_custom_call.1} parent=5 // pred_check
        _
      $region10: #{tpu_custom_call.1} parent=5 // pred_check_branch
        %220 = sbr.rel (%p217) target = $region12
      $region11: #{tpu_custom_call.1} parent=5 // pred_region
        %s221 = ssub.s32 %s47, 1
      $region12: #{tpu_custom_call.1} parent=5 // pred_fallthru
        _
      %p222 = scmp.lt.s32.totalorder %s47, 12
      // Predicated region
      $region13: #{tpu_custom_call.1} parent=5 // pred_check
        %p223 = pneg %p222
      $region14: #{tpu_custom_call.1} parent=5 // pred_check_branch
        %225 = sbr.rel (%p223) target = $region16
      $region15: #{tpu_custom_call.1} parent=5 // pred_region
        // Predicated region
        $region17: #{tpu_custom_call.1} parent=15 // pred_check
          %p226 = pneg %p81
        $region18: #{tpu_custom_call.1} parent=15 // pred_check_branch
          %228 = sbr.rel (%p226) target = $region20
        $region19: #{tpu_custom_call.1} parent=15 // pred_region
          %s229 = sand.u32 %s71, 1
          %s230 = scalar_lea.sflag [#allocation10], %s229
          %s231 = sand.u32 %s71, 1
          %s232 = smul.addr %s231, 128
          %s233 = scalar_lea.vmem [#allocation9], %s232
          %s234 = sld [smem:[#allocation4 + %s54]]
          %s235 = smul.u32 16, %s234
          %s237 = ssub.s32 2048, 2048
          %238 = vsyncadd %s230, %s237
          %s239 = smul.addr %s235, 2
          %s240 = smul.addr %s239, 64
          %s241 = scalar_lea.hbm %s5, %s240
          %s242 = sshll.u32 %s233, 4
          %s243 = int_to_ptr.vmem [resolvable:$true] %s242
          %248 = dma.hbm_to_vmem [thread:$0]  %s241, 2048, %s243, %s230, 128, 128, 8
        $region20: #{tpu_custom_call.1} parent=15 // pred_fallthru
          _
        // Predicated region
        $region21: #{tpu_custom_call.1} parent=15 // pred_check
          %p249 = pneg %p111
        $region22: #{tpu_custom_call.1} parent=15 // pred_check_branch
          %251 = sbr.rel (%p249) target = $region24
        $region23: #{tpu_custom_call.1} parent=15 // pred_region
          %s252 = sand.u32 %s47, 1
          %s253 = scalar_lea.sflag [#allocation13], %s252
          %s254 = sand.u32 %s101, 1
          %s255 = smul.addr %s254, 128
          %s256 = scalar_lea.vmem [#allocation12], %s255
          %s257 = sld [smem:[#allocation5 + %s54]]
          %s259 = ssub.s32 2048, 2048
          %260 = vsyncadd %s253, %s259
          %s261 = smul.addr %s257, 128
          %s262 = sadd.s32 %s55, %s261
          %s263 = smul.addr %s262, 64
          %s264 = scalar_lea.hbm %s6, %s263
          %s265 = sshll.u32 %s256, 4
          %s266 = int_to_ptr.vmem [resolvable:$true] %s265
          %271 = dma.hbm_to_vmem [thread:$0]  %s264, 2048, %s266, %s253, 256, 64, 4
        $region24: #{tpu_custom_call.1} parent=15 // pred_fallthru
          _
        // Predicated region
        $region25: #{tpu_custom_call.1} parent=15 // pred_check
          %p272 = pneg %p143
        $region26: #{tpu_custom_call.1} parent=15 // pred_check_branch
          %274 = sbr.rel (%p272) target = $region28
        $region27: #{tpu_custom_call.1} parent=15 // pred_region
          %s275 = sand.u32 %s47, 1
          %s276 = scalar_lea.sflag [#allocation13], %s275
          %s277 = sand.u32 %s133, 1
          %s278 = smul.addr %s277, 128
          %s279 = scalar_lea.vmem [#allocation14], %s278
          %s280 = sld [smem:[#allocation5 + %s54]]
          %s281 = sadd.s32 %s55, 2
          %s283 = ssub.s32 2048, 2048
          %284 = vsyncadd %s276, %s283
          %s285 = smul.addr %s280, 128
          %s286 = sadd.s32 %s281, %s285
          %s287 = smul.addr %s286, 64
          %s288 = scalar_lea.hbm %s7, %s287
          %s289 = sshll.u32 %s279, 4
          %s290 = int_to_ptr.vmem [resolvable:$true] %s289
          %295 = dma.hbm_to_vmem [thread:$0]  %s288, 2048, %s290, %s276, 256, 64, 4
        $region28: #{tpu_custom_call.1} parent=15 // pred_fallthru
          _
        // Predicated region
        $region29: #{tpu_custom_call.1} parent=15 // pred_check
          %p296 = pneg %p173
        $region30: #{tpu_custom_call.1} parent=15 // pred_check_branch
          %298 = sbr.rel (%p296) target = $region32
        $region31: #{tpu_custom_call.1} parent=15 // pred_region
          %s299 = sand.u32 %s163, 1
          %s300 = scalar_lea.sflag [#allocation16], %s299
          %s301 = sand.u32 %s163, 1
          %s302 = smul.addr %s301, 128
          %s303 = scalar_lea.vmem [#allocation15], %s302
          %s304 = sld [smem:[#allocation5 + %s54]]
          %s305 = smul.u32 16, %s55
          %s307 = ssub.s32 2048, 2048
          %308 = vsyncadd %s300, %s307
          %s309 = smul.addr %s305, 2
          %s310 = smul.addr %s304, 64
          %s311 = sadd.s32 %s309, %s310
          %s312 = smul.addr %s311, 64
          %s313 = scalar_lea.hbm %s8, %s312
          %s314 = sshll.u32 %s303, 4
          %s315 = int_to_ptr.vmem [resolvable:$true] %s314
          %320 = dma.hbm_to_vmem [thread:$0]  %s313, 2048, %s315, %s300, 128, 128, 8
        $region32: #{tpu_custom_call.1} parent=15 // pred_fallthru
          _
      $region16: #{tpu_custom_call.1} parent=5 // pred_fallthru
        _
      %p321 = scmp.le.s32.totalorder 1, %s47
      %p322 = scmp.lt.s32.totalorder %s47, 13
      %p323 = pnand %p321, %p322
      %p324 = pneg %p323
      // Predicated region
      $region33: #{tpu_custom_call.1} parent=5 // pred_check
        _
      $region34: #{tpu_custom_call.1} parent=5 // pred_check_branch
        %326 = sbr.rel (%p323) target = $region36
      $region35: #{tpu_custom_call.1} parent=5 // pred_region
        %s327 = ssub.s32 %s47, 1
        %s328 = sand.u32 %s74, 1
        %s329 = scalar_lea.sflag [#allocation10], %s328
        %s330 = sand.u32 %s74, 1
        %s331 = smul.addr %s330, 128
        %s332 = scalar_lea.vmem [#allocation9], %s331
        // Predicated region
        $region37: #{tpu_custom_call.1} parent=35 // pred_check
          %p333 = pneg %p87
        $region38: #{tpu_custom_call.1} parent=35 // pred_check_branch
          %335 = sbr.rel (%p333) target = $region40
        $region39: #{tpu_custom_call.1} parent=35 // pred_region
          %336 = dma.done %s329, 2048
        $region40: #{tpu_custom_call.1} parent=35 // pred_fallthru
          _
        %s337 = sand.u32 %s52, 1
        %s338 = scalar_lea.sflag [#allocation13], %s337
        %s339 = sand.u32 %s104, 1
        %s340 = smul.addr %s339, 128
        %s341 = scalar_lea.vmem [#allocation12], %s340
        // Predicated region
        $region41: #{tpu_custom_call.1} parent=35 // pred_check
          %p342 = pneg %p117
        $region42: #{tpu_custom_call.1} parent=35 // pred_check_branch
          %344 = sbr.rel (%p342) target = $region44
        $region43: #{tpu_custom_call.1} parent=35 // pred_region
          %345 = dma.done %s338, 2048
        $region44: #{tpu_custom_call.1} parent=35 // pred_fallthru
          _
        %s346 = sand.u32 %s52, 1
        %s347 = scalar_lea.sflag [#allocation13], %s346
        %s348 = sand.u32 %s136, 1
        %s349 = smul.addr %s348, 128
        %s350 = scalar_lea.vmem [#allocation14], %s349
        // Predicated region
        $region45: #{tpu_custom_call.1} parent=35 // pred_check
          %p351 = pneg %p149
        $region46: #{tpu_custom_call.1} parent=35 // pred_check_branch
          %353 = sbr.rel (%p351) target = $region48
        $region47: #{tpu_custom_call.1} parent=35 // pred_region
          %354 = dma.done %s347, 2048
        $region48: #{tpu_custom_call.1} parent=35 // pred_fallthru
          _
        %s355 = sand.u32 %s166, 1
        %s356 = scalar_lea.sflag [#allocation16], %s355
        %s357 = sand.u32 %s166, 1
        %s358 = smul.addr %s357, 128
        %s359 = scalar_lea.vmem [#allocation15], %s358
        // Predicated region
        $region49: #{tpu_custom_call.1} parent=35 // pred_check
          %p360 = pneg %p179
        $region50: #{tpu_custom_call.1} parent=35 // pred_check_branch
          %362 = sbr.rel (%p360) target = $region52
        $region51: #{tpu_custom_call.1} parent=35 // pred_region
          %363 = dma.done %s356, 2048
        $region52: #{tpu_custom_call.1} parent=35 // pred_fallthru
          _
        %s364 = sand.u32 %s74, 1
        %s365 = scalar_lea.sflag [#allocation10], %s364
        %s366 = sand.u32 %s74, 1
        %s367 = smul.addr %s366, 128
        %s368 = scalar_lea.vmem [#allocation9], %s367
        %p369 = pneg %p87
        %p370 = pneg %p84
        %s371 = sand.u32 %s52, 1
        %s372 = scalar_lea.sflag [#allocation13], %s371
        %s373 = sand.u32 %s104, 1
        %s374 = smul.addr %s373, 128
        %s375 = scalar_lea.vmem [#allocation12], %s374
        %p376 = pneg %p117
        %p377 = pneg %p114
        %s378 = sand.u32 %s52, 1
        %s379 = scalar_lea.sflag [#allocation13], %s378
        %s380 = sand.u32 %s136, 1
        %s381 = smul.addr %s380, 128
        %s382 = scalar_lea.vmem [#allocation14], %s381
        %p383 = pneg %p149
        %p384 = pneg %p146
        %s385 = sand.u32 %s166, 1
        %s386 = scalar_lea.sflag [#allocation16], %s385
        %s387 = sand.u32 %s166, 1
        %s388 = smul.addr %s387, 128
        %s389 = scalar_lea.vmem [#allocation15], %s388
        %p390 = pneg %p179
        %p391 = pneg %p176
        %p392 = pneg %p207
        %p393 = pneg %p204
        %s394 = sand.u32 %s194, 1
        %s395 = scalar_lea.sflag [#allocation11], %s394
        %s396 = sand.u32 %s194, 1
        %s397 = smul.addr %s396, 128
        %s398 = scalar_lea.vmem [#allocation17], %s397
        %s399 = sld [smem:[#allocation4 + %s56]]
        %s400 = smul.u32 16, %s399
        %s401 = sld [smem:[#allocation5 + %s56]]
        %s402 = sld [smem:[#allocation5 + %s56]]
        %s403 = sadd.s32 %s57, 2
        %s404 = sld [smem:[#allocation5 + %s56]]
        %s405 = smul.u32 16, %s57
        %s406 = sld [smem:[#allocation4 + %s56]]
        %s407 = smul.u32 16, %s406
        %p411 = scmp.eq.s32.totalorder %s57, 0
        // Predicated region
        $region53: #{tpu_custom_call.1} parent=35 // pred_check
          %p412 = pneg %p411
        $region54: #{tpu_custom_call.1} parent=35 // pred_check_branch
          %414 = sbr.rel (%p412) target = $region56
        $region55: #{tpu_custom_call.1} parent=35 // pred_region
          %415 = vst [vmem:[#allocation2] sm:$0xff] 0.0
          %416 = vst [vmem:[#allocation2 + $0x8] sm:$0xff] 0.0
          %417 = vst [vmem:[#allocation2 + $0x10] sm:$0xff] 0.0
          %418 = vst [vmem:[#allocation2 + $0x18] sm:$0xff] 0.0
          %419 = vst [vmem:[#allocation2 + $0x20] sm:$0xff] 0.0
          %420 = vst [vmem:[#allocation2 + $0x28] sm:$0xff] 0.0
          %421 = vst [vmem:[#allocation2 + $0x30] sm:$0xff] 0.0
          %422 = vst [vmem:[#allocation2 + $0x38] sm:$0xff] 0.0
          %423 = vst [vmem:[#allocation2 + $0x40] sm:$0xff] 0.0
          %424 = vst [vmem:[#allocation2 + $0x48] sm:$0xff] 0.0
          %425 = vst [vmem:[#allocation2 + $0x50] sm:$0xff] 0.0
          %426 = vst [vmem:[#allocation2 + $0x58] sm:$0xff] 0.0
          %427 = vst [vmem:[#allocation2 + $0x60] sm:$0xff] 0.0
          %428 = vst [vmem:[#allocation2 + $0x68] sm:$0xff] 0.0
          %429 = vst [vmem:[#allocation2 + $0x70] sm:$0xff] 0.0
          %430 = vst [vmem:[#allocation2 + $0x78] sm:$0xff] 0.0
          %431 = vst [vmem:[#allocation2 + $0x80] sm:$0xff] 0.0
          %432 = vst [vmem:[#allocation2 + $0x88] sm:$0xff] 0.0
          %433 = vst [vmem:[#allocation2 + $0x90] sm:$0xff] 0.0
          %434 = vst [vmem:[#allocation2 + $0x98] sm:$0xff] 0.0
          %435 = vst [vmem:[#allocation2 + $0xa0] sm:$0xff] 0.0
          %436 = vst [vmem:[#allocation2 + $0xa8] sm:$0xff] 0.0
          %437 = vst [vmem:[#allocation2 + $0xb0] sm:$0xff] 0.0
          %438 = vst [vmem:[#allocation2 + $0xb8] sm:$0xff] 0.0
          %439 = vst [vmem:[#allocation2 + $0xc0] sm:$0xff] 0.0
          %440 = vst [vmem:[#allocation2 + $0xc8] sm:$0xff] 0.0
          %441 = vst [vmem:[#allocation2 + $0xd0] sm:$0xff] 0.0
          %442 = vst [vmem:[#allocation2 + $0xd8] sm:$0xff] 0.0
          %443 = vst [vmem:[#allocation2 + $0xe0] sm:$0xff] 0.0
          %444 = vst [vmem:[#allocation2 + $0xe8] sm:$0xff] 0.0
          %445 = vst [vmem:[#allocation2 + $0xf0] sm:$0xff] 0.0
          %446 = vst [vmem:[#allocation2 + $0xf8] sm:$0xff] 0.0
        $region56: #{tpu_custom_call.1} parent=35 // pred_fallthru
          _
        %v447 = vld [vmem:[%s332] sm:$0xff]
        %v448 = vld [vmem:[%s332 + $0x8] sm:$0xff]
        %v449 = vld [vmem:[%s332 + $0x10] sm:$0xff]
        %v450 = vld [vmem:[%s332 + $0x18] sm:$0xff]
        %v451 = vld [vmem:[%s332 + $0x20] sm:$0xff]
        %v452 = vld [vmem:[%s332 + $0x28] sm:$0xff]
        %v453 = vld [vmem:[%s332 + $0x30] sm:$0xff]
        %v454 = vld [vmem:[%s332 + $0x38] sm:$0xff]
        %v455 = vld [vmem:[%s332 + $0x40] sm:$0xff]
        %v456 = vld [vmem:[%s332 + $0x48] sm:$0xff]
        %v457 = vld [vmem:[%s332 + $0x50] sm:$0xff]
        %v458 = vld [vmem:[%s332 + $0x58] sm:$0xff]
        %v459 = vld [vmem:[%s332 + $0x60] sm:$0xff]
        %v460 = vld [vmem:[%s332 + $0x68] sm:$0xff]
        %v461 = vld [vmem:[%s332 + $0x70] sm:$0xff]
        %v462 = vld [vmem:[%s332 + $0x78] sm:$0xff]
        %v463 = vld [vmem:[%s341] sm:$0xf]
        %v464 = vld [vmem:[%s341 + $0x4] sm:$0xf]
        %v465 = vld [vmem:[%s341 + $0x8] sm:$0xf]
        %v466 = vld [vmem:[%s341 + $0xc] sm:$0xf]
        %v467 = vld [vmem:[%s341 + $0x10] sm:$0xf]
        %v468 = vld [vmem:[%s341 + $0x14] sm:$0xf]
        %v469 = vld [vmem:[%s341 + $0x18] sm:$0xf]
        %v470 = vld [vmem:[%s341 + $0x1c] sm:$0xf]
        %v471 = vld [vmem:[%s341 + $0x20] sm:$0xf]
        %v472 = vld [vmem:[%s341 + $0x24] sm:$0xf]
        %v473 = vld [vmem:[%s341 + $0x28] sm:$0xf]
        %v474 = vld [vmem:[%s341 + $0x2c] sm:$0xf]
        %v475 = vld [vmem:[%s341 + $0x30] sm:$0xf]
        %v476 = vld [vmem:[%s341 + $0x34] sm:$0xf]
        %v477 = vld [vmem:[%s341 + $0x38] sm:$0xf]
        %v478 = vld [vmem:[%s341 + $0x3c] sm:$0xf]
        %v479 = vld [vmem:[%s341 + $0x40] sm:$0xf]
        %v480 = vld [vmem:[%s341 + $0x44] sm:$0xf]
        %v481 = vld [vmem:[%s341 + $0x48] sm:$0xf]
        %v482 = vld [vmem:[%s341 + $0x4c] sm:$0xf]
        %v483 = vld [vmem:[%s341 + $0x50] sm:$0xf]
        %v484 = vld [vmem:[%s341 + $0x54] sm:$0xf]
        %v485 = vld [vmem:[%s341 + $0x58] sm:$0xf]
        %v486 = vld [vmem:[%s341 + $0x5c] sm:$0xf]
        %v487 = vld [vmem:[%s341 + $0x60] sm:$0xf]
        %v488 = vld [vmem:[%s341 + $0x64] sm:$0xf]
        %v489 = vld [vmem:[%s341 + $0x68] sm:$0xf]
        %v490 = vld [vmem:[%s341 + $0x6c] sm:$0xf]
        %v491 = vld [vmem:[%s341 + $0x70] sm:$0xf]
        %v492 = vld [vmem:[%s341 + $0x74] sm:$0xf]
        %v493 = vld [vmem:[%s341 + $0x78] sm:$0xf]
        %v494 = vld [vmem:[%s341 + $0x7c] sm:$0xf]
        %v511 = vunpack.c.l.b16 %v447
        %v512 = vunpack.c.h.b16 %v447
        %v513 = vunpack.c.l.b16 %v448
        %v514 = vunpack.c.h.b16 %v448
        %v515 = vunpack.c.l.b16 %v449
        %v516 = vunpack.c.h.b16 %v449
        %v517 = vunpack.c.l.b16 %v450
        %v518 = vunpack.c.h.b16 %v450
        %v519 = vunpack.c.l.b16 %v451
        %v520 = vunpack.c.h.b16 %v451
        %v521 = vunpack.c.l.b16 %v452
        %v522 = vunpack.c.h.b16 %v452
        %v523 = vunpack.c.l.b16 %v453
        %v524 = vunpack.c.h.b16 %v453
        %v525 = vunpack.c.l.b16 %v454
        %v526 = vunpack.c.h.b16 %v454
        %v527 = vunpack.c.l.b16 %v455
        %v528 = vunpack.c.h.b16 %v455
        %v529 = vunpack.c.l.b16 %v456
        %v530 = vunpack.c.h.b16 %v456
        %v531 = vunpack.c.l.b16 %v457
        %v532 = vunpack.c.h.b16 %v457
        %v533 = vunpack.c.l.b16 %v458
        %v534 = vunpack.c.h.b16 %v458
        %v535 = vunpack.c.l.b16 %v459
        %v536 = vunpack.c.h.b16 %v459
        %v537 = vunpack.c.l.b16 %v460
        %v538 = vunpack.c.h.b16 %v460
        %v539 = vunpack.c.l.b16 %v461
        %v540 = vunpack.c.h.b16 %v461
        %v541 = vunpack.c.l.b16 %v462
        %v542 = vunpack.c.h.b16 %v462
        %v543 = vpack.c.b16 %v513, %v511
        %v544 = vpack.c.b16 %v514, %v512
        %v545 = vpack.c.b16 %v517, %v515
        %v546 = vpack.c.b16 %v518, %v516
        %v547 = vpack.c.b16 %v521, %v519
        %v548 = vpack.c.b16 %v522, %v520
        %v549 = vpack.c.b16 %v525, %v523
        %v550 = vpack.c.b16 %v526, %v524
        %v551 = vpack.c.b16 %v529, %v527
        %v552 = vpack.c.b16 %v530, %v528
        %v553 = vpack.c.b16 %v533, %v531
        %v554 = vpack.c.b16 %v534, %v532
        %v555 = vpack.c.b16 %v537, %v535
        %v556 = vpack.c.b16 %v538, %v536
        %v557 = vpack.c.b16 %v541, %v539
        %v558 = vpack.c.b16 %v542, %v540
        %v607 = vunpack.c.l.b16 %v463
        %v608 = vunpack.c.l.b16 %v464
        %v609 = vunpack.c.l.b16 %v465
        %v610 = vunpack.c.l.b16 %v466
        %v611 = vunpack.c.l.b16 %v467
        %v612 = vunpack.c.l.b16 %v468
        %v613 = vunpack.c.l.b16 %v469
        %v614 = vunpack.c.l.b16 %v470
        %v615 = vunpack.c.l.b16 %v471
        %v616 = vunpack.c.l.b16 %v472
        %v617 = vunpack.c.l.b16 %v473
        %v618 = vunpack.c.l.b16 %v474
        %v619 = vunpack.c.l.b16 %v475
        %v620 = vunpack.c.l.b16 %v476
        %v621 = vunpack.c.l.b16 %v477
        %v622 = vunpack.c.l.b16 %v478
        %v623 = vunpack.c.l.b16 %v479
        %v624 = vunpack.c.l.b16 %v480
        %v625 = vunpack.c.l.b16 %v481
        %v626 = vunpack.c.l.b16 %v482
        %v627 = vunpack.c.l.b16 %v483
        %v628 = vunpack.c.l.b16 %v484
        %v629 = vunpack.c.l.b16 %v485
        %v630 = vunpack.c.l.b16 %v486
        %v631 = vunpack.c.l.b16 %v487
        %v632 = vunpack.c.l.b16 %v488
        %v633 = vunpack.c.l.b16 %v489
        %v634 = vunpack.c.l.b16 %v490
        %v635 = vunpack.c.l.b16 %v491
        %v636 = vunpack.c.l.b16 %v492
        %v637 = vunpack.c.l.b16 %v493
        %v638 = vunpack.c.l.b16 %v494
        %v639 = vpack.c.b16 %v608, %v607
        %v640 = vpack.c.b16 %v610, %v609
        %v641 = vpack.c.b16 %v612, %v611
        %v642 = vpack.c.b16 %v614, %v613
        %v643 = vpack.c.b16 %v616, %v615
        %v644 = vpack.c.b16 %v618, %v617
        %v645 = vpack.c.b16 %v620, %v619
        %v646 = vpack.c.b16 %v622, %v621
        %v647 = vpack.c.b16 %v624, %v623
        %v648 = vpack.c.b16 %v626, %v625
        %v649 = vpack.c.b16 %v628, %v627
        %v650 = vpack.c.b16 %v630, %v629
        %v651 = vpack.c.b16 %v632, %v631
        %v652 = vpack.c.b16 %v634, %v633
        %v653 = vpack.c.b16 %v636, %v635
        %v654 = vpack.c.b16 %v638, %v637
        %671 = vmatprep.subr.bf16.mxu0 0
        %672 = vmatpush1.bf16.msra.mxu0 %v639
        %673 = vmatprep.subr.bf16.mxu0 0
        %674 = vmatpush1.bf16.msra.mxu0 %v640
        %675 = vmatprep.subr.bf16.mxu0 0
        %676 = vmatpush1.bf16.msra.mxu0 %v641
        %677 = vmatprep.subr.bf16.mxu0 0
        %678 = vmatpush1.bf16.msra.mxu0 %v642
        %679 = vmatprep.subr.bf16.mxu0 0
        %680 = vmatpush1.bf16.msra.mxu0 %v643
        %681 = vmatprep.subr.bf16.mxu0 0
        %682 = vmatpush1.bf16.msra.mxu0 %v644
        %683 = vmatprep.subr.bf16.mxu0 0
        %684 = vmatpush1.bf16.msra.mxu0 %v645
        %685 = vmatprep.subr.bf16.mxu0 0
        %686 = vmatpush1.bf16.msra.mxu0 %v646
        %687 = vmatprep.subr.bf16.mxu0 0
        %688 = vmatpush1.bf16.msra.mxu0 %v647
        %689 = vmatprep.subr.bf16.mxu0 0
        %690 = vmatpush1.bf16.msra.mxu0 %v648
        %691 = vmatprep.subr.bf16.mxu0 0
        %692 = vmatpush1.bf16.msra.mxu0 %v649
        %693 = vmatprep.subr.bf16.mxu0 0
        %694 = vmatpush1.bf16.msra.mxu0 %v650
        %695 = vmatprep.subr.bf16.mxu0 0
        %696 = vmatpush1.bf16.msra.mxu0 %v651
        %697 = vmatprep.subr.bf16.mxu0 0
        %698 = vmatpush1.bf16.msra.mxu0 %v652
        %699 = vmatprep.subr.bf16.mxu0 0
        %700 = vmatpush1.bf16.msra.mxu0 %v653
        %701 = vmatprep.subr.bf16.mxu0 0
        %702 = vmatpush1.bf16.msra.mxu0 %v654
        %703 = vmatprep.mubr.bf16.mxu0 %v544
        %704 = vmatmul.mubr.bf16.gmra.mrb[0].mxu0 %v543
        %v705 = vpop.f32.mrb[0].mxu0
        %v706 = vadd.f32 0.0, %v705
        %v707 = vpop.f32.mrb[0].mxu0
        %v708 = vpop.f32.mrb[0].mxu0
        %v709 = vadd.f32 0.0, %v708
        %v710 = vpop.f32.mrb[0].mxu0
        %711 = vmatprep.mubr.bf16.mxu0 %v546
        %712 = vmatmul.mubr.bf16.gmra.mrb[0].mxu0 %v545
        %v713 = vpop.f32.mrb[0].mxu0
        %v714 = vadd.f32 0.0, %v713
        %v715 = vpop.f32.mrb[0].mxu0
        %v716 = vpop.f32.mrb[0].mxu0
        %v717 = vadd.f32 0.0, %v716
        %v718 = vpop.f32.mrb[0].mxu0
        %719 = vmatprep.mubr.bf16.mxu0 %v548
        %720 = vmatmul.mubr.bf16.gmra.mrb[0].mxu0 %v547
        %v721 = vpop.f32.mrb[0].mxu0
        %v722 = vadd.f32 0.0, %v721
        %v723 = vpop.f32.mrb[0].mxu0
        %v724 = vpop.f32.mrb[0].mxu0
        %v725 = vadd.f32 0.0, %v724
        %v726 = vpop.f32.mrb[0].mxu0
        %727 = vmatprep.mubr.bf16.mxu0 %v550
        %728 = vmatmul.mubr.bf16.gmra.mrb[0].mxu0 %v549
        %v729 = vpop.f32.mrb[0].mxu0
        %v730 = vadd.f32 0.0, %v729
        %v731 = vpop.f32.mrb[0].mxu0
        %v732 = vpop.f32.mrb[0].mxu0
        %v733 = vadd.f32 0.0, %v732
        %v734 = vpop.f32.mrb[0].mxu0
        %735 = vmatprep.mubr.bf16.mxu0 %v552
        %736 = vmatmul.mubr.bf16.gmra.mrb[0].mxu0 %v551
        %v737 = vpop.f32.mrb[0].mxu0
        %v738 = vadd.f32 0.0, %v737
        %v739 = vpop.f32.mrb[0].mxu0
        %v740 = vpop.f32.mrb[0].mxu0
        %v741 = vadd.f32 0.0, %v740
        %v742 = vpop.f32.mrb[0].mxu0
        %743 = vmatprep.mubr.bf16.mxu0 %v554
        %744 = vmatmul.mubr.bf16.gmra.mrb[0].mxu0 %v553
        %v745 = vpop.f32.mrb[0].mxu0
        %v746 = vadd.f32 0.0, %v745
        %v747 = vpop.f32.mrb[0].mxu0
        %v748 = vpop.f32.mrb[0].mxu0
        %v749 = vadd.f32 0.0, %v748
        %v750 = vpop.f32.mrb[0].mxu0
        %751 = vmatprep.mubr.bf16.mxu0 %v556
        %752 = vmatmul.mubr.bf16.gmra.mrb[0].mxu0 %v555
        %v753 = vpop.f32.mrb[0].mxu0
        %v754 = vadd.f32 0.0, %v753
        %v755 = vpop.f32.mrb[0].mxu0
        %v756 = vpop.f32.mrb[0].mxu0
        %v757 = vadd.f32 0.0, %v756
        %v758 = vpop.f32.mrb[0].mxu0
        %759 = vmatprep.mubr.bf16.mxu0 %v558
        %760 = vmatmul.mubr.bf16.gmra.mrb[0].mxu0 %v557
        %v761 = vpop.f32.mrb[0].mxu0
        %v762 = vadd.f32 0.0, %v761
        %v763 = vpop.f32.mrb[0].mxu0
        %v764 = vpop.f32.mrb[0].mxu0
        %v765 = vadd.f32 0.0, %v764
        %v766 = vpop.f32.mrb[0].mxu0
        %767 = vdwg.mxu0
        %v768 = vld [vmem:[%s350] sm:$0xf]
        %v769 = vld [vmem:[%s350 + $0x4] sm:$0xf]
        %v770 = vld [vmem:[%s350 + $0x8] sm:$0xf]
        %v771 = vld [vmem:[%s350 + $0xc] sm:$0xf]
        %v772 = vld [vmem:[%s350 + $0x10] sm:$0xf]
        %v773 = vld [vmem:[%s350 + $0x14] sm:$0xf]
        %v774 = vld [vmem:[%s350 + $0x18] sm:$0xf]
        %v775 = vld [vmem:[%s350 + $0x1c] sm:$0xf]
        %v776 = vld [vmem:[%s350 + $0x20] sm:$0xf]
        %v777 = vld [vmem:[%s350 + $0x24] sm:$0xf]
        %v778 = vld [vmem:[%s350 + $0x28] sm:$0xf]
        %v779 = vld [vmem:[%s350 + $0x2c] sm:$0xf]
        %v780 = vld [vmem:[%s350 + $0x30] sm:$0xf]
        %v781 = vld [vmem:[%s350 + $0x34] sm:$0xf]
        %v782 = vld [vmem:[%s350 + $0x38] sm:$0xf]
        %v783 = vld [vmem:[%s350 + $0x3c] sm:$0xf]
        %v784 = vld [vmem:[%s350 + $0x40] sm:$0xf]
        %v785 = vld [vmem:[%s350 + $0x44] sm:$0xf]
        %v786 = vld [vmem:[%s350 + $0x48] sm:$0xf]
        %v787 = vld [vmem:[%s350 + $0x4c] sm:$0xf]
        %v788 = vld [vmem:[%s350 + $0x50] sm:$0xf]
        %v789 = vld [vmem:[%s350 + $0x54] sm:$0xf]
        %v790 = vld [vmem:[%s350 + $0x58] sm:$0xf]
        %v791 = vld [vmem:[%s350 + $0x5c] sm:$0xf]
        %v792 = vld [vmem:[%s350 + $0x60] sm:$0xf]
        %v793 = vld [vmem:[%s350 + $0x64] sm:$0xf]
        %v794 = vld [vmem:[%s350 + $0x68] sm:$0xf]
        %v795 = vld [vmem:[%s350 + $0x6c] sm:$0xf]
        %v796 = vld [vmem:[%s350 + $0x70] sm:$0xf]
        %v797 = vld [vmem:[%s350 + $0x74] sm:$0xf]
        %v798 = vld [vmem:[%s350 + $0x78] sm:$0xf]
        %v799 = vld [vmem:[%s350 + $0x7c] sm:$0xf]
        %v832 = vunpack.c.l.b16 %v768
        %v833 = vunpack.c.l.b16 %v769
        %v834 = vunpack.c.l.b16 %v770
        %v835 = vunpack.c.l.b16 %v771
        %v836 = vunpack.c.l.b16 %v772
        %v837 = vunpack.c.l.b16 %v773
        %v838 = vunpack.c.l.b16 %v774
        %v839 = vunpack.c.l.b16 %v775
        %v840 = vunpack.c.l.b16 %v776
        %v841 = vunpack.c.l.b16 %v777
        %v842 = vunpack.c.l.b16 %v778
        %v843 = vunpack.c.l.b16 %v779
        %v844 = vunpack.c.l.b16 %v780
        %v845 = vunpack.c.l.b16 %v781
        %v846 = vunpack.c.l.b16 %v782
        %v847 = vunpack.c.l.b16 %v783
        %v848 = vunpack.c.l.b16 %v784
        %v849 = vunpack.c.l.b16 %v785
        %v850 = vunpack.c.l.b16 %v786
        %v851 = vunpack.c.l.b16 %v787
        %v852 = vunpack.c.l.b16 %v788
        %v853 = vunpack.c.l.b16 %v789
        %v854 = vunpack.c.l.b16 %v790
        %v855 = vunpack.c.l.b16 %v791
        %v856 = vunpack.c.l.b16 %v792
        %v857 = vunpack.c.l.b16 %v793
        %v858 = vunpack.c.l.b16 %v794
        %v859 = vunpack.c.l.b16 %v795
        %v860 = vunpack.c.l.b16 %v796
        %v861 = vunpack.c.l.b16 %v797
        %v862 = vunpack.c.l.b16 %v798
        %v863 = vunpack.c.l.b16 %v799
        %v864 = vpack.c.b16 %v833, %v832
        %v865 = vpack.c.b16 %v835, %v834
        %v866 = vpack.c.b16 %v837, %v836
        %v867 = vpack.c.b16 %v839, %v838
        %v868 = vpack.c.b16 %v841, %v840
        %v869 = vpack.c.b16 %v843, %v842
        %v870 = vpack.c.b16 %v845, %v844
        %v871 = vpack.c.b16 %v847, %v846
        %v872 = vpack.c.b16 %v849, %v848
        %v873 = vpack.c.b16 %v851, %v850
        %v874 = vpack.c.b16 %v853, %v852
        %v875 = vpack.c.b16 %v855, %v854
        %v876 = vpack.c.b16 %v857, %v856
        %v877 = vpack.c.b16 %v859, %v858
        %v878 = vpack.c.b16 %v861, %v860
        %v879 = vpack.c.b16 %v863, %v862
        %896 = vmatprep.subr.bf16.mxu0 0
        %897 = vmatpush1.bf16.msra.mxu0 %v864
        %898 = vmatprep.subr.bf16.mxu0 0
        %899 = vmatpush1.bf16.msra.mxu0 %v865
        %900 = vmatprep.subr.bf16.mxu0 0
        %901 = vmatpush1.bf16.msra.mxu0 %v866
        %902 = vmatprep.subr.bf16.mxu0 0
        %903 = vmatpush1.bf16.msra.mxu0 %v867
        %904 = vmatprep.subr.bf16.mxu0 0
        %905 = vmatpush1.bf16.msra.mxu0 %v868
        %906 = vmatprep.subr.bf16.mxu0 0
        %907 = vmatpush1.bf16.msra.mxu0 %v869
        %908 = vmatprep.subr.bf16.mxu0 0
        %909 = vmatpush1.bf16.msra.mxu0 %v870
        %910 = vmatprep.subr.bf16.mxu0 0
        %911 = vmatpush1.bf16.msra.mxu0 %v871
        %912 = vmatprep.subr.bf16.mxu0 0
        %913 = vmatpush1.bf16.msra.mxu0 %v872
        %914 = vmatprep.subr.bf16.mxu0 0
        %915 = vmatpush1.bf16.msra.mxu0 %v873
        %916 = vmatprep.subr.bf16.mxu0 0
        %917 = vmatpush1.bf16.msra.mxu0 %v874
        %918 = vmatprep.subr.bf16.mxu0 0
        %919 = vmatpush1.bf16.msra.mxu0 %v875
        %920 = vmatprep.subr.bf16.mxu0 0
        %921 = vmatpush1.bf16.msra.mxu0 %v876
        %922 = vmatprep.subr.bf16.mxu0 0
        %923 = vmatpush1.bf16.msra.mxu0 %v877
        %924 = vmatprep.subr.bf16.mxu0 0
        %925 = vmatpush1.bf16.msra.mxu0 %v878
        %926 = vmatprep.subr.bf16.mxu0 0
        %927 = vmatpush1.bf16.msra.mxu0 %v879
        %928 = vmatprep.mubr.bf16.mxu0 %v544
        %929 = vmatmul.mubr.bf16.gmra.mrb[0].mxu0 %v543
        %v930 = vpop.f32.mrb[0].mxu0
        %v931 = vadd.f32 0.0, %v930
        %v932 = vpop.f32.mrb[0].mxu0
        %v933 = vpop.f32.mrb[0].mxu0
        %v934 = vadd.f32 0.0, %v933
        %v935 = vpop.f32.mrb[0].mxu0
        %936 = vmatprep.mubr.bf16.mxu0 %v546
        %937 = vmatmul.mubr.bf16.gmra.mrb[0].mxu0 %v545
        %v938 = vpop.f32.mrb[0].mxu0
        %v939 = vadd.f32 0.0, %v938
        %v940 = vpop.f32.mrb[0].mxu0
        %v941 = vpop.f32.mrb[0].mxu0
        %v942 = vadd.f32 0.0, %v941
        %v943 = vpop.f32.mrb[0].mxu0
        %944 = vmatprep.mubr.bf16.mxu0 %v548
        %945 = vmatmul.mubr.bf16.gmra.mrb[0].mxu0 %v547
        %v946 = vpop.f32.mrb[0].mxu0
        %v947 = vadd.f32 0.0, %v946
        %v948 = vpop.f32.mrb[0].mxu0
        %v949 = vpop.f32.mrb[0].mxu0
        %v950 = vadd.f32 0.0, %v949
        %v951 = vpop.f32.mrb[0].mxu0
        %952 = vmatprep.mubr.bf16.mxu0 %v550
        %953 = vmatmul.mubr.bf16.gmra.mrb[0].mxu0 %v549
        %v954 = vpop.f32.mrb[0].mxu0
        %v955 = vadd.f32 0.0, %v954
        %v956 = vpop.f32.mrb[0].mxu0
        %v957 = vpop.f32.mrb[0].mxu0
        %v958 = vadd.f32 0.0, %v957
        %v959 = vpop.f32.mrb[0].mxu0
        %960 = vmatprep.mubr.bf16.mxu0 %v552
        %961 = vmatmul.mubr.bf16.gmra.mrb[0].mxu0 %v551
        %v962 = vpop.f32.mrb[0].mxu0
        %v963 = vadd.f32 0.0, %v962
        %v964 = vpop.f32.mrb[0].mxu0
        %v965 = vpop.f32.mrb[0].mxu0
        %v966 = vadd.f32 0.0, %v965
        %v967 = vpop.f32.mrb[0].mxu0
        %968 = vmatprep.mubr.bf16.mxu0 %v554
        %969 = vmatmul.mubr.bf16.gmra.mrb[0].mxu0 %v553
        %v970 = vpop.f32.mrb[0].mxu0
        %v971 = vadd.f32 0.0, %v970
        %v972 = vpop.f32.mrb[0].mxu0
        %v973 = vpop.f32.mrb[0].mxu0
        %v974 = vadd.f32 0.0, %v973
        %v975 = vpop.f32.mrb[0].mxu0
        %976 = vmatprep.mubr.bf16.mxu0 %v556
        %977 = vmatmul.mubr.bf16.gmra.mrb[0].mxu0 %v555
        %v978 = vpop.f32.mrb[0].mxu0
        %v979 = vadd.f32 0.0, %v978
        %v980 = vpop.f32.mrb[0].mxu0
        %v981 = vpop.f32.mrb[0].mxu0
        %v982 = vadd.f32 0.0, %v981
        %v983 = vpop.f32.mrb[0].mxu0
        %984 = vmatprep.mubr.bf16.mxu0 %v558
        %985 = vmatmul.mubr.bf16.gmra.mrb[0].mxu0 %v557
        %v986 = vpop.f32.mrb[0].mxu0
        %v987 = vadd.f32 0.0, %v986
        %v988 = vpop.f32.mrb[0].mxu0
        %v989 = vpop.f32.mrb[0].mxu0
        %v990 = vadd.f32 0.0, %v989
        %v991 = vpop.f32.mrb[0].mxu0
        %992 = vdwg.mxu0
        %v993 = vxor.u32 %v706, 2147483648
        %v994 = vxor.u32 %v709, 2147483648
        %v995 = vxor.u32 %v714, 2147483648
        %v996 = vxor.u32 %v717, 2147483648
        %v997 = vxor.u32 %v722, 2147483648
        %v998 = vxor.u32 %v725, 2147483648
        %v999 = vxor.u32 %v730, 2147483648
        %v1000 = vxor.u32 %v733, 2147483648
        %v1001 = vxor.u32 %v738, 2147483648
        %v1002 = vxor.u32 %v741, 2147483648
        %v1003 = vxor.u32 %v746, 2147483648
        %v1004 = vxor.u32 %v749, 2147483648
        %v1005 = vxor.u32 %v754, 2147483648
        %v1006 = vxor.u32 %v757, 2147483648
        %v1007 = vxor.u32 %v762, 2147483648
        %v1008 = vxor.u32 %v765, 2147483648
        %v1009 = vmul.f32 %v993, 1.442695
        %v1010 = vpow.pop %v1009
        %v1011 = vmul.f32 %v994, 1.442695
        %v1012 = vpow.pop %v1011
        %v1013 = vmul.f32 %v995, 1.442695
        %v1014 = vpow.pop %v1013
        %v1015 = vmul.f32 %v996, 1.442695
        %v1016 = vpow.pop %v1015
        %v1017 = vmul.f32 %v997, 1.442695
        %v1018 = vpow.pop %v1017
        %v1019 = vmul.f32 %v998, 1.442695
        %v1020 = vpow.pop %v1019
        %v1021 = vmul.f32 %v999, 1.442695
        %v1022 = vpow.pop %v1021
        %v1023 = vmul.f32 %v1000, 1.442695
        %v1024 = vpow.pop %v1023
        %v1025 = vmul.f32 %v1001, 1.442695
        %v1026 = vpow.pop %v1025
        %v1027 = vmul.f32 %v1002, 1.442695
        %v1028 = vpow.pop %v1027
        %v1029 = vmul.f32 %v1003, 1.442695
        %v1030 = vpow.pop %v1029
        %v1031 = vmul.f32 %v1004, 1.442695
        %v1032 = vpow.pop %v1031
        %v1033 = vmul.f32 %v1005, 1.442695
        %v1034 = vpow.pop %v1033
        %v1035 = vmul.f32 %v1006, 1.442695
        %v1036 = vpow.pop %v1035
        %v1037 = vmul.f32 %v1007, 1.442695
        %v1038 = vpow.pop %v1037
        %v1039 = vmul.f32 %v1008, 1.442695
        %v1040 = vpow.pop %v1039
        %v1041 = vadd.f32 %v1010, 1.0
        %v1042 = vadd.f32 %v1012, 1.0
        %v1043 = vadd.f32 %v1014, 1.0
        %v1044 = vadd.f32 %v1016, 1.0
        %v1045 = vadd.f32 %v1018, 1.0
        %v1046 = vadd.f32 %v1020, 1.0
        %v1047 = vadd.f32 %v1022, 1.0
        %v1048 = vadd.f32 %v1024, 1.0
        %v1049 = vadd.f32 %v1026, 1.0
        %v1050 = vadd.f32 %v1028, 1.0
        %v1051 = vadd.f32 %v1030, 1.0
        %v1052 = vadd.f32 %v1032, 1.0
        %v1053 = vadd.f32 %v1034, 1.0
        %v1054 = vadd.f32 %v1036, 1.0
        %v1055 = vadd.f32 %v1038, 1.0
        %v1056 = vadd.f32 %v1040, 1.0
        %v1057 = vrcp.pop %v1041
        %v1058 = vmul.f32 1.0, %v1057
        %v1059 = vrcp.pop %v1042
        %v1060 = vmul.f32 1.0, %v1059
        %v1061 = vrcp.pop %v1043
        %v1062 = vmul.f32 1.0, %v1061
        %v1063 = vrcp.pop %v1044
        %v1064 = vmul.f32 1.0, %v1063
        %v1065 = vrcp.pop %v1045
        %v1066 = vmul.f32 1.0, %v1065
        %v1067 = vrcp.pop %v1046
        %v1068 = vmul.f32 1.0, %v1067
        %v1069 = vrcp.pop %v1047
        %v1070 = vmul.f32 1.0, %v1069
        %v1071 = vrcp.pop %v1048
        %v1072 = vmul.f32 1.0, %v1071
        %v1073 = vrcp.pop %v1049
        %v1074 = vmul.f32 1.0, %v1073
        %v1075 = vrcp.pop %v1050
        %v1076 = vmul.f32 1.0, %v1075
        %v1077 = vrcp.pop %v1051
        %v1078 = vmul.f32 1.0, %v1077
        %v1079 = vrcp.pop %v1052
        %v1080 = vmul.f32 1.0, %v1079
        %v1081 = vrcp.pop %v1053
        %v1082 = vmul.f32 1.0, %v1081
        %v1083 = vrcp.pop %v1054
        %v1084 = vmul.f32 1.0, %v1083
        %v1085 = vrcp.pop %v1055
        %v1086 = vmul.f32 1.0, %v1085
        %v1087 = vrcp.pop %v1056
        %v1088 = vmul.f32 1.0, %v1087
        %v1089 = vmul.f32 %v706, %v1058
        %v1090 = vmul.f32 %v709, %v1060
        %v1091 = vmul.f32 %v714, %v1062
        %v1092 = vmul.f32 %v717, %v1064
        %v1093 = vmul.f32 %v722, %v1066
        %v1094 = vmul.f32 %v725, %v1068
        %v1095 = vmul.f32 %v730, %v1070
        %v1096 = vmul.f32 %v733, %v1072
        %v1097 = vmul.f32 %v738, %v1074
        %v1098 = vmul.f32 %v741, %v1076
        %v1099 = vmul.f32 %v746, %v1078
        %v1100 = vmul.f32 %v749, %v1080
        %v1101 = vmul.f32 %v754, %v1082
        %v1102 = vmul.f32 %v757, %v1084
        %v1103 = vmul.f32 %v762, %v1086
        %v1104 = vmul.f32 %v765, %v1088
        %v1105 = vmul.f32 %v1089, %v931
        %v1106 = vmul.f32 %v1090, %v934
        %v1107 = vmul.f32 %v1091, %v939
        %v1108 = vmul.f32 %v1092, %v942
        %v1109 = vmul.f32 %v1093, %v947
        %v1110 = vmul.f32 %v1094, %v950
        %v1111 = vmul.f32 %v1095, %v955
        %v1112 = vmul.f32 %v1096, %v958
        %v1113 = vmul.f32 %v1097, %v963
        %v1114 = vmul.f32 %v1098, %v966
        %v1115 = vmul.f32 %v1099, %v971
        %v1116 = vmul.f32 %v1100, %v974
        %v1117 = vmul.f32 %v1101, %v979
        %v1118 = vmul.f32 %v1102, %v982
        %v1119 = vmul.f32 %v1103, %v987
        %v1120 = vmul.f32 %v1104, %v990
        %v1121 = vpack.c.bf16 %v1106, %v1105
        %v1122 = vpack.c.bf16 %v1108, %v1107
        %v1123 = vpack.c.bf16 %v1110, %v1109
        %v1124 = vpack.c.bf16 %v1112, %v1111
        %v1125 = vpack.c.bf16 %v1114, %v1113
        %v1126 = vpack.c.bf16 %v1116, %v1115
        %v1127 = vpack.c.bf16 %v1118, %v1117
        %v1128 = vpack.c.bf16 %v1120, %v1119
        %v1129 = vld [vmem:[#allocation2] sm:$0xff]
        %v1130 = vld [vmem:[#allocation2 + $0x8] sm:$0xff]
        %v1131 = vld [vmem:[#allocation2 + $0x10] sm:$0xff]
        %v1132 = vld [vmem:[#allocation2 + $0x18] sm:$0xff]
        %v1133 = vld [vmem:[#allocation2 + $0x20] sm:$0xff]
        %v1134 = vld [vmem:[#allocation2 + $0x28] sm:$0xff]
        %v1135 = vld [vmem:[#allocation2 + $0x30] sm:$0xff]
        %v1136 = vld [vmem:[#allocation2 + $0x38] sm:$0xff]
        %v1137 = vld [vmem:[#allocation2 + $0x40] sm:$0xff]
        %v1138 = vld [vmem:[#allocation2 + $0x48] sm:$0xff]
        %v1139 = vld [vmem:[#allocation2 + $0x50] sm:$0xff]
        %v1140 = vld [vmem:[#allocation2 + $0x58] sm:$0xff]
        %v1141 = vld [vmem:[#allocation2 + $0x60] sm:$0xff]
        %v1142 = vld [vmem:[#allocation2 + $0x68] sm:$0xff]
        %v1143 = vld [vmem:[#allocation2 + $0x70] sm:$0xff]
        %v1144 = vld [vmem:[#allocation2 + $0x78] sm:$0xff]
        %v1145 = vld [vmem:[#allocation2 + $0x80] sm:$0xff]
        %v1146 = vld [vmem:[#allocation2 + $0x88] sm:$0xff]
        %v1147 = vld [vmem:[#allocation2 + $0x90] sm:$0xff]
        %v1148 = vld [vmem:[#allocation2 + $0x98] sm:$0xff]
        %v1149 = vld [vmem:[#allocation2 + $0xa0] sm:$0xff]
        %v1150 = vld [vmem:[#allocation2 + $0xa8] sm:$0xff]
        %v1151 = vld [vmem:[#allocation2 + $0xb0] sm:$0xff]
        %v1152 = vld [vmem:[#allocation2 + $0xb8] sm:$0xff]
        %v1153 = vld [vmem:[#allocation2 + $0xc0] sm:$0xff]
        %v1154 = vld [vmem:[#allocation2 + $0xc8] sm:$0xff]
        %v1155 = vld [vmem:[#allocation2 + $0xd0] sm:$0xff]
        %v1156 = vld [vmem:[#allocation2 + $0xd8] sm:$0xff]
        %v1157 = vld [vmem:[#allocation2 + $0xe0] sm:$0xff]
        %v1158 = vld [vmem:[#allocation2 + $0xe8] sm:$0xff]
        %v1159 = vld [vmem:[#allocation2 + $0xf0] sm:$0xff]
        %v1160 = vld [vmem:[#allocation2 + $0xf8] sm:$0xff]
        %v1161 = vld [vmem:[%s359] sm:$0xff]
        %v1162 = vld [vmem:[%s359 + $0x8] sm:$0xff]
        %v1163 = vld [vmem:[%s359 + $0x10] sm:$0xff]
        %v1164 = vld [vmem:[%s359 + $0x18] sm:$0xff]
        %v1165 = vld [vmem:[%s359 + $0x20] sm:$0xff]
        %v1166 = vld [vmem:[%s359 + $0x28] sm:$0xff]
        %v1167 = vld [vmem:[%s359 + $0x30] sm:$0xff]
        %v1168 = vld [vmem:[%s359 + $0x38] sm:$0xff]
        %v1169 = vld [vmem:[%s359 + $0x40] sm:$0xff]
        %v1170 = vld [vmem:[%s359 + $0x48] sm:$0xff]
        %v1171 = vld [vmem:[%s359 + $0x50] sm:$0xff]
        %v1172 = vld [vmem:[%s359 + $0x58] sm:$0xff]
        %v1173 = vld [vmem:[%s359 + $0x60] sm:$0xff]
        %v1174 = vld [vmem:[%s359 + $0x68] sm:$0xff]
        %v1175 = vld [vmem:[%s359 + $0x70] sm:$0xff]
        %v1176 = vld [vmem:[%s359 + $0x78] sm:$0xff]
        %v1193 = vunpack.c.l.b16 %v1161
        %v1194 = vunpack.c.h.b16 %v1161
        %v1195 = vunpack.c.l.b16 %v1162
        %v1196 = vunpack.c.h.b16 %v1162
        %v1197 = vunpack.c.l.b16 %v1163
        %v1198 = vunpack.c.h.b16 %v1163
        %v1199 = vunpack.c.l.b16 %v1164
        %v1200 = vunpack.c.h.b16 %v1164
        %v1201 = vunpack.c.l.b16 %v1165
        %v1202 = vunpack.c.h.b16 %v1165
        %v1203 = vunpack.c.l.b16 %v1166
        %v1204 = vunpack.c.h.b16 %v1166
        %v1205 = vunpack.c.l.b16 %v1167
        %v1206 = vunpack.c.h.b16 %v1167
        %v1207 = vunpack.c.l.b16 %v1168
        %v1208 = vunpack.c.h.b16 %v1168
        %v1209 = vunpack.c.l.b16 %v1169
        %v1210 = vunpack.c.h.b16 %v1169
        %v1211 = vunpack.c.l.b16 %v1170
        %v1212 = vunpack.c.h.b16 %v1170
        %v1213 = vunpack.c.l.b16 %v1171
        %v1214 = vunpack.c.h.b16 %v1171
        %v1215 = vunpack.c.l.b16 %v1172
        %v1216 = vunpack.c.h.b16 %v1172
        %v1217 = vunpack.c.l.b16 %v1173
        %v1218 = vunpack.c.h.b16 %v1173
        %v1219 = vunpack.c.l.b16 %v1174
        %v1220 = vunpack.c.h.b16 %v1174
        %v1221 = vunpack.c.l.b16 %v1175
        %v1222 = vunpack.c.h.b16 %v1175
        %v1223 = vunpack.c.l.b16 %v1176
        %v1224 = vunpack.c.h.b16 %v1176
        %v1225 = vpack.c.b16 %v1195, %v1193
        %v1226 = vpack.c.b16 %v1196, %v1194
        %v1227 = vpack.c.b16 %v1199, %v1197
        %v1228 = vpack.c.b16 %v1200, %v1198
        %v1229 = vpack.c.b16 %v1203, %v1201
        %v1230 = vpack.c.b16 %v1204, %v1202
        %v1231 = vpack.c.b16 %v1207, %v1205
        %v1232 = vpack.c.b16 %v1208, %v1206
        %v1233 = vpack.c.b16 %v1211, %v1209
        %v1234 = vpack.c.b16 %v1212, %v1210
        %v1235 = vpack.c.b16 %v1215, %v1213
        %v1236 = vpack.c.b16 %v1216, %v1214
        %v1237 = vpack.c.b16 %v1219, %v1217
        %v1238 = vpack.c.b16 %v1220, %v1218
        %v1239 = vpack.c.b16 %v1223, %v1221
        %v1240 = vpack.c.b16 %v1224, %v1222
        %1257 = vmatprep.subr.bf16.mxu0 %v1226
        %1258 = vmatpush1.bf16.msra.mxu0 %v1225
        %1259 = vmatprep.subr.bf16.mxu0 %v1228
        %1260 = vmatpush1.bf16.msra.mxu0 %v1227
        %1261 = vmatprep.subr.bf16.mxu0 %v1230
        %1262 = vmatpush1.bf16.msra.mxu0 %v1229
        %1263 = vmatprep.subr.bf16.mxu0 %v1232
        %1264 = vmatpush1.bf16.msra.mxu0 %v1231
        %1265 = vmatprep.subr.bf16.mxu0 %v1234
        %1266 = vmatpush1.bf16.msra.mxu0 %v1233
        %1267 = vmatprep.subr.bf16.mxu0 %v1236
        %1268 = vmatpush1.bf16.msra.mxu0 %v1235
        %1269 = vmatprep.subr.bf16.mxu0 %v1238
        %1270 = vmatpush1.bf16.msra.mxu0 %v1237
        %1271 = vmatprep.subr.bf16.mxu0 %v1240
        %1272 = vmatpush1.bf16.msra.mxu0 %v1239
        %1273 = vmatprep.subr.bf16.mxu0 0
        %1274 = vmatpush1.bf16.msra.mxu0 0
        %1275 = vmatprep.subr.bf16.mxu0 0
        %1276 = vmatpush1.bf16.msra.mxu0 0
        %1277 = vmatprep.subr.bf16.mxu0 0
        %1278 = vmatpush1.bf16.msra.mxu0 0
        %1279 = vmatprep.subr.bf16.mxu0 0
        %1280 = vmatpush1.bf16.msra.mxu0 0
        %1281 = vmatprep.subr.bf16.mxu0 0
        %1282 = vmatpush1.bf16.msra.mxu0 0
        %1283 = vmatprep.subr.bf16.mxu0 0
        %1284 = vmatpush1.bf16.msra.mxu0 0
        %1285 = vmatprep.subr.bf16.mxu0 0
        %1286 = vmatpush1.bf16.msra.mxu0 0
        %1287 = vmatprep.subr.bf16.mxu0 0
        %1288 = vmatpush1.bf16.msra.mxu0 0
        %1289 = vmatprep.mubr.bf16.mxu0 0
        %1290 = vmatmul.mubr.bf16.gmra.mrb[0].mxu0 %v1121
        %v1291 = vpop.f32.mrb[0].mxu0
        %v1292 = vadd.f32 0.0, %v1291
        %v1293 = vpop.f32.mrb[0].mxu0
        %v1294 = vadd.f32 0.0, %v1293
        %v1295 = vpop.f32.mrb[0].mxu0
        %v1296 = vadd.f32 0.0, %v1295
        %v1297 = vpop.f32.mrb[0].mxu0
        %v1298 = vadd.f32 0.0, %v1297
        %1299 = vmatprep.mubr.bf16.mxu0 0
        %1300 = vmatmul.mubr.bf16.gmra.mrb[0].mxu0 %v1122
        %v1301 = vpop.f32.mrb[0].mxu0
        %v1302 = vadd.f32 0.0, %v1301
        %v1303 = vpop.f32.mrb[0].mxu0
        %v1304 = vadd.f32 0.0, %v1303
        %v1305 = vpop.f32.mrb[0].mxu0
        %v1306 = vadd.f32 0.0, %v1305
        %v1307 = vpop.f32.mrb[0].mxu0
        %v1308 = vadd.f32 0.0, %v1307
        %1309 = vmatprep.mubr.bf16.mxu0 0
        %1310 = vmatmul.mubr.bf16.gmra.mrb[0].mxu0 %v1123
        %v1311 = vpop.f32.mrb[0].mxu0
        %v1312 = vadd.f32 0.0, %v1311
        %v1313 = vpop.f32.mrb[0].mxu0
        %v1314 = vadd.f32 0.0, %v1313
        %v1315 = vpop.f32.mrb[0].mxu0
        %v1316 = vadd.f32 0.0, %v1315
        %v1317 = vpop.f32.mrb[0].mxu0
        %v1318 = vadd.f32 0.0, %v1317
        %1319 = vmatprep.mubr.bf16.mxu0 0
        %1320 = vmatmul.mubr.bf16.gmra.mrb[0].mxu0 %v1124
        %v1321 = vpop.f32.mrb[0].mxu0
        %v1322 = vadd.f32 0.0, %v1321
        %v1323 = vpop.f32.mrb[0].mxu0
        %v1324 = vadd.f32 0.0, %v1323
        %v1325 = vpop.f32.mrb[0].mxu0
        %v1326 = vadd.f32 0.0, %v1325
        %v1327 = vpop.f32.mrb[0].mxu0
        %v1328 = vadd.f32 0.0, %v1327
        %1329 = vmatprep.mubr.bf16.mxu0 0
        %1330 = vmatmul.mubr.bf16.gmra.mrb[0].mxu0 %v1125
        %v1331 = vpop.f32.mrb[0].mxu0
        %v1332 = vadd.f32 0.0, %v1331
        %v1333 = vpop.f32.mrb[0].mxu0
        %v1334 = vadd.f32 0.0, %v1333
        %v1335 = vpop.f32.mrb[0].mxu0
        %v1336 = vadd.f32 0.0, %v1335
        %v1337 = vpop.f32.mrb[0].mxu0
        %v1338 = vadd.f32 0.0, %v1337
        %1339 = vmatprep.mubr.bf16.mxu0 0
        %1340 = vmatmul.mubr.bf16.gmra.mrb[0].mxu0 %v1126
        %v1341 = vpop.f32.mrb[0].mxu0
        %v1342 = vadd.f32 0.0, %v1341
        %v1343 = vpop.f32.mrb[0].mxu0
        %v1344 = vadd.f32 0.0, %v1343
        %v1345 = vpop.f32.mrb[0].mxu0
        %v1346 = vadd.f32 0.0, %v1345
        %v1347 = vpop.f32.mrb[0].mxu0
        %v1348 = vadd.f32 0.0, %v1347
        %1349 = vmatprep.mubr.bf16.mxu0 0
        %1350 = vmatmul.mubr.bf16.gmra.mrb[0].mxu0 %v1127
        %v1351 = vpop.f32.mrb[0].mxu0
        %v1352 = vadd.f32 0.0, %v1351
        %v1353 = vpop.f32.mrb[0].mxu0
        %v1354 = vadd.f32 0.0, %v1353
        %v1355 = vpop.f32.mrb[0].mxu0
        %v1356 = vadd.f32 0.0, %v1355
        %v1357 = vpop.f32.mrb[0].mxu0
        %v1358 = vadd.f32 0.0, %v1357
        %1359 = vmatprep.mubr.bf16.mxu0 0
        %1360 = vmatmul.mubr.bf16.gmra.mrb[0].mxu0 %v1128
        %v1361 = vpop.f32.mrb[0].mxu0
        %v1362 = vadd.f32 0.0, %v1361
        %v1363 = vpop.f32.mrb[0].mxu0
        %v1364 = vadd.f32 0.0, %v1363
        %v1365 = vpop.f32.mrb[0].mxu0
        %v1366 = vadd.f32 0.0, %v1365
        %v1367 = vpop.f32.mrb[0].mxu0
        %v1368 = vadd.f32 0.0, %v1367
        %1369 = vdwg.mxu0
        %v1370 = vadd.f32 %v1129, %v1292
        %v1371 = vadd.f32 %v1130, %v1294
        %v1372 = vadd.f32 %v1131, %v1296
        %v1373 = vadd.f32 %v1132, %v1298
        %v1374 = vadd.f32 %v1133, %v1302
        %v1375 = vadd.f32 %v1134, %v1304
        %v1376 = vadd.f32 %v1135, %v1306
        %v1377 = vadd.f32 %v1136, %v1308
        %v1378 = vadd.f32 %v1137, %v1312
        %v1379 = vadd.f32 %v1138, %v1314
        %v1380 = vadd.f32 %v1139, %v1316
        %v1381 = vadd.f32 %v1140, %v1318
        %v1382 = vadd.f32 %v1141, %v1322
        %v1383 = vadd.f32 %v1142, %v1324
        %v1384 = vadd.f32 %v1143, %v1326
        %v1385 = vadd.f32 %v1144, %v1328
        %v1386 = vadd.f32 %v1145, %v1332
        %v1387 = vadd.f32 %v1146, %v1334
        %v1388 = vadd.f32 %v1147, %v1336
        %v1389 = vadd.f32 %v1148, %v1338
        %v1390 = vadd.f32 %v1149, %v1342
        %v1391 = vadd.f32 %v1150, %v1344
        %v1392 = vadd.f32 %v1151, %v1346
        %v1393 = vadd.f32 %v1152, %v1348
        %v1394 = vadd.f32 %v1153, %v1352
        %v1395 = vadd.f32 %v1154, %v1354
        %v1396 = vadd.f32 %v1155, %v1356
        %v1397 = vadd.f32 %v1156, %v1358
        %v1398 = vadd.f32 %v1157, %v1362
        %v1399 = vadd.f32 %v1158, %v1364
        %v1400 = vadd.f32 %v1159, %v1366
        %v1401 = vadd.f32 %v1160, %v1368
        %1402 = vst [vmem:[#allocation2] sm:$0xff] %v1370
        %1403 = vst [vmem:[#allocation2 + $0x8] sm:$0xff] %v1371
        %1404 = vst [vmem:[#allocation2 + $0x10] sm:$0xff] %v1372
        %1405 = vst [vmem:[#allocation2 + $0x18] sm:$0xff] %v1373
        %1406 = vst [vmem:[#allocation2 + $0x20] sm:$0xff] %v1374
        %1407 = vst [vmem:[#allocation2 + $0x28] sm:$0xff] %v1375
        %1408 = vst [vmem:[#allocation2 + $0x30] sm:$0xff] %v1376
        %1409 = vst [vmem:[#allocation2 + $0x38] sm:$0xff] %v1377
        %1410 = vst [vmem:[#allocation2 + $0x40] sm:$0xff] %v1378
        %1411 = vst [vmem:[#allocation2 + $0x48] sm:$0xff] %v1379
        %1412 = vst [vmem:[#allocation2 + $0x50] sm:$0xff] %v1380
        %1413 = vst [vmem:[#allocation2 + $0x58] sm:$0xff] %v1381
        %1414 = vst [vmem:[#allocation2 + $0x60] sm:$0xff] %v1382
        %1415 = vst [vmem:[#allocation2 + $0x68] sm:$0xff] %v1383
        %1416 = vst [vmem:[#allocation2 + $0x70] sm:$0xff] %v1384
        %1417 = vst [vmem:[#allocation2 + $0x78] sm:$0xff] %v1385
        %1418 = vst [vmem:[#allocation2 + $0x80] sm:$0xff] %v1386
        %1419 = vst [vmem:[#allocation2 + $0x88] sm:$0xff] %v1387
        %1420 = vst [vmem:[#allocation2 + $0x90] sm:$0xff] %v1388
        %1421 = vst [vmem:[#allocation2 + $0x98] sm:$0xff] %v1389
        %1422 = vst [vmem:[#allocation2 + $0xa0] sm:$0xff] %v1390
        %1423 = vst [vmem:[#allocation2 + $0xa8] sm:$0xff] %v1391
        %1424 = vst [vmem:[#allocation2 + $0xb0] sm:$0xff] %v1392
        %1425 = vst [vmem:[#allocation2 + $0xb8] sm:$0xff] %v1393
        %1426 = vst [vmem:[#allocation2 + $0xc0] sm:$0xff] %v1394
        %1427 = vst [vmem:[#allocation2 + $0xc8] sm:$0xff] %v1395
        %1428 = vst [vmem:[#allocation2 + $0xd0] sm:$0xff] %v1396
        %1429 = vst [vmem:[#allocation2 + $0xd8] sm:$0xff] %v1397
        %1430 = vst [vmem:[#allocation2 + $0xe0] sm:$0xff] %v1398
        %1431 = vst [vmem:[#allocation2 + $0xe8] sm:$0xff] %v1399
        %1432 = vst [vmem:[#allocation2 + $0xf0] sm:$0xff] %v1400
        %1433 = vst [vmem:[#allocation2 + $0xf8] sm:$0xff] %v1401
        %p1434 = scmp.eq.s32.totalorder %s57, 1
        // Predicated region
        $region57: #{tpu_custom_call.1} parent=35 // pred_check
          %p1435 = pneg %p1434
        $region58: #{tpu_custom_call.1} parent=35 // pred_check_branch
          %1437 = sbr.rel (%p1435) target = $region60
        $region59: #{tpu_custom_call.1} parent=35 // pred_region
          %s1438 = sld [smem:[#allocation4 + %s56]]
          %s1439 = smul.u32 %s1438, 128
          %v1440 = vlaneseq
          %v1441 = vshrl.u32 %v1440, 7
          %v1442 = vadd.s32 %v1441, 8
          %v1443 = vadd.s32 %v1441, 16
          %v1444 = vadd.s32 %v1441, 24
          %v1445 = vadd.s32 %v1441, 32
          %v1446 = vadd.s32 %v1441, 40
          %v1447 = vadd.s32 %v1441, 48
          %v1448 = vadd.s32 %v1441, 56
          %v1449 = vadd.s32 %v1441, 64
          %v1450 = vadd.s32 %v1441, 72
          %v1451 = vadd.s32 %v1441, 80
          %v1452 = vadd.s32 %v1441, 88
          %v1453 = vadd.s32 %v1441, 96
          %v1454 = vadd.s32 %v1441, 104
          %v1455 = vadd.s32 %v1441, 112
          %v1456 = vadd.s32 %v1441, 120
          %v1457 = vstv %s1439
          %v1458 = vadd.s32 %v1457, %v1441
          %v1459 = vadd.s32 %v1457, %v1442
          %v1460 = vadd.s32 %v1457, %v1443
          %v1461 = vadd.s32 %v1457, %v1444
          %v1462 = vadd.s32 %v1457, %v1445
          %v1463 = vadd.s32 %v1457, %v1446
          %v1464 = vadd.s32 %v1457, %v1447
          %v1465 = vadd.s32 %v1457, %v1448
          %v1466 = vadd.s32 %v1457, %v1449
          %v1467 = vadd.s32 %v1457, %v1450
          %v1468 = vadd.s32 %v1457, %v1451
          %v1469 = vadd.s32 %v1457, %v1452
          %v1470 = vadd.s32 %v1457, %v1453
          %v1471 = vadd.s32 %v1457, %v1454
          %v1472 = vadd.s32 %v1457, %v1455
          %v1473 = vadd.s32 %v1457, %v1456
          %s1474 = sld [smem:[#allocation6 + %s56]]
          %v1475 = vstv %s1474
          %vm1476 = vcmp.ge.s32.totalorder %v1458, %v1475
          %vm1477 = vcmp.ge.s32.totalorder %v1459, %v1475
          %vm1478 = vcmp.ge.s32.totalorder %v1460, %v1475
          %vm1479 = vcmp.ge.s32.totalorder %v1461, %v1475
          %vm1480 = vcmp.ge.s32.totalorder %v1462, %v1475
          %vm1481 = vcmp.ge.s32.totalorder %v1463, %v1475
          %vm1482 = vcmp.ge.s32.totalorder %v1464, %v1475
          %vm1483 = vcmp.ge.s32.totalorder %v1465, %v1475
          %vm1484 = vcmp.ge.s32.totalorder %v1466, %v1475
          %vm1485 = vcmp.ge.s32.totalorder %v1467, %v1475
          %vm1486 = vcmp.ge.s32.totalorder %v1468, %v1475
          %vm1487 = vcmp.ge.s32.totalorder %v1469, %v1475
          %vm1488 = vcmp.ge.s32.totalorder %v1470, %v1475
          %vm1489 = vcmp.ge.s32.totalorder %v1471, %v1475
          %vm1490 = vcmp.ge.s32.totalorder %v1472, %v1475
          %vm1491 = vcmp.ge.s32.totalorder %v1473, %v1475
          %s1492 = sld [smem:[#allocation7 + %s56]]
          %v1493 = vstv %s1492
          %vm1494 = vcmp.lt.s32.totalorder %v1458, %v1493
          %vm1495 = vcmp.lt.s32.totalorder %v1459, %v1493
          %vm1496 = vcmp.lt.s32.totalorder %v1460, %v1493
          %vm1497 = vcmp.lt.s32.totalorder %v1461, %v1493
          %vm1498 = vcmp.lt.s32.totalorder %v1462, %v1493
          %vm1499 = vcmp.lt.s32.totalorder %v1463, %v1493
          %vm1500 = vcmp.lt.s32.totalorder %v1464, %v1493
          %vm1501 = vcmp.lt.s32.totalorder %v1465, %v1493
          %vm1502 = vcmp.lt.s32.totalorder %v1466, %v1493
          %vm1503 = vcmp.lt.s32.totalorder %v1467, %v1493
          %vm1504 = vcmp.lt.s32.totalorder %v1468, %v1493
          %vm1505 = vcmp.lt.s32.totalorder %v1469, %v1493
          %vm1506 = vcmp.lt.s32.totalorder %v1470, %v1493
          %vm1507 = vcmp.lt.s32.totalorder %v1471, %v1493
          %vm1508 = vcmp.lt.s32.totalorder %v1472, %v1493
          %vm1509 = vcmp.lt.s32.totalorder %v1473, %v1493
          %vm1510 = vmand %vm1476, %vm1494
          %vm1511 = vmand %vm1477, %vm1495
          %vm1512 = vmand %vm1478, %vm1496
          %vm1513 = vmand %vm1479, %vm1497
          %vm1514 = vmand %vm1480, %vm1498
          %vm1515 = vmand %vm1481, %vm1499
          %vm1516 = vmand %vm1482, %vm1500
          %vm1517 = vmand %vm1483, %vm1501
          %vm1518 = vmand %vm1484, %vm1502
          %vm1519 = vmand %vm1485, %vm1503
          %vm1520 = vmand %vm1486, %vm1504
          %vm1521 = vmand %vm1487, %vm1505
          %vm1522 = vmand %vm1488, %vm1506
          %vm1523 = vmand %vm1489, %vm1507
          %vm1524 = vmand %vm1490, %vm1508
          %vm1525 = vmand %vm1491, %vm1509
          %v1526 = vld [vmem:[#allocation2] sm:$0xff]
          %v1527 = vld [vmem:[#allocation2 + $0x8] sm:$0xff]
          %v1528 = vld [vmem:[#allocation2 + $0x10] sm:$0xff]
          %v1529 = vld [vmem:[#allocation2 + $0x18] sm:$0xff]
          %v1530 = vld [vmem:[#allocation2 + $0x20] sm:$0xff]
          %v1531 = vld [vmem:[#allocation2 + $0x28] sm:$0xff]
          %v1532 = vld [vmem:[#allocation2 + $0x30] sm:$0xff]
          %v1533 = vld [vmem:[#allocation2 + $0x38] sm:$0xff]
          %v1534 = vld [vmem:[#allocation2 + $0x40] sm:$0xff]
          %v1535 = vld [vmem:[#allocation2 + $0x48] sm:$0xff]
          %v1536 = vld [vmem:[#allocation2 + $0x50] sm:$0xff]
          %v1537 = vld [vmem:[#allocation2 + $0x58] sm:$0xff]
          %v1538 = vld [vmem:[#allocation2 + $0x60] sm:$0xff]
          %v1539 = vld [vmem:[#allocation2 + $0x68] sm:$0xff]
          %v1540 = vld [vmem:[#allocation2 + $0x70] sm:$0xff]
          %v1541 = vld [vmem:[#allocation2 + $0x78] sm:$0xff]
          %v1542 = vld [vmem:[#allocation2 + $0x80] sm:$0xff]
          %v1543 = vld [vmem:[#allocation2 + $0x88] sm:$0xff]
          %v1544 = vld [vmem:[#allocation2 + $0x90] sm:$0xff]
          %v1545 = vld [vmem:[#allocation2 + $0x98] sm:$0xff]
          %v1546 = vld [vmem:[#allocation2 + $0xa0] sm:$0xff]
          %v1547 = vld [vmem:[#allocation2 + $0xa8] sm:$0xff]
          %v1548 = vld [vmem:[#allocation2 + $0xb0] sm:$0xff]
          %v1549 = vld [vmem:[#allocation2 + $0xb8] sm:$0xff]
          %v1550 = vld [vmem:[#allocation2 + $0xc0] sm:$0xff]
          %v1551 = vld [vmem:[#allocation2 + $0xc8] sm:$0xff]
          %v1552 = vld [vmem:[#allocation2 + $0xd0] sm:$0xff]
          %v1553 = vld [vmem:[#allocation2 + $0xd8] sm:$0xff]
          %v1554 = vld [vmem:[#allocation2 + $0xe0] sm:$0xff]
          %v1555 = vld [vmem:[#allocation2 + $0xe8] sm:$0xff]
          %v1556 = vld [vmem:[#allocation2 + $0xf0] sm:$0xff]
          %v1557 = vld [vmem:[#allocation2 + $0xf8] sm:$0xff]
          %v1558 = vpack.c.bf16 %v1528, %v1526
          %v1559 = vpack.c.bf16 %v1529, %v1527
          %v1560 = vpack.c.bf16 %v1532, %v1530
          %v1561 = vpack.c.bf16 %v1533, %v1531
          %v1562 = vpack.c.bf16 %v1536, %v1534
          %v1563 = vpack.c.bf16 %v1537, %v1535
          %v1564 = vpack.c.bf16 %v1540, %v1538
          %v1565 = vpack.c.bf16 %v1541, %v1539
          %v1566 = vpack.c.bf16 %v1544, %v1542
          %v1567 = vpack.c.bf16 %v1545, %v1543
          %v1568 = vpack.c.bf16 %v1548, %v1546
          %v1569 = vpack.c.bf16 %v1549, %v1547
          %v1570 = vpack.c.bf16 %v1552, %v1550
          %v1571 = vpack.c.bf16 %v1553, %v1551
          %v1572 = vpack.c.bf16 %v1556, %v1554
          %v1573 = vpack.c.bf16 %v1557, %v1555
          %s1574 = sld [smem:[#allocation8 + %s56]]
          %p1575 = scmp.eq.s32.totalorder %s1574, 1
          // Predicated region
          $region61: #{tpu_custom_call.1} parent=59 // pred_check
            %p1576 = pneg %p1575
          $region62: #{tpu_custom_call.1} parent=59 // pred_check_branch
            %1578 = sbr.rel (%p1576) target = $region64
          $region63: #{tpu_custom_call.1} parent=59 // pred_region
            %v1579 = vsel %vm1510, 1, 0
            %v1580 = vsel %vm1511, 1, 0
            %v1581 = vsel %vm1512, 1, 0
            %v1582 = vsel %vm1513, 1, 0
            %v1583 = vsel %vm1514, 1, 0
            %v1584 = vsel %vm1515, 1, 0
            %v1585 = vsel %vm1516, 1, 0
            %v1586 = vsel %vm1517, 1, 0
            %v1587 = vsel %vm1518, 1, 0
            %v1588 = vsel %vm1519, 1, 0
            %v1589 = vsel %vm1520, 1, 0
            %v1590 = vsel %vm1521, 1, 0
            %v1591 = vsel %vm1522, 1, 0
            %v1592 = vsel %vm1523, 1, 0
            %v1593 = vsel %vm1524, 1, 0
            %v1594 = vsel %vm1525, 1, 0
            %vm1595 = vcmp.eq.s32.totalorder %v1579, 1
            %vm1596 = vcmp.eq.s32.totalorder %v1580, 1
            %vm1597 = vcmp.eq.s32.totalorder %v1581, 1
            %vm1598 = vcmp.eq.s32.totalorder %v1582, 1
            %vm1599 = vcmp.eq.s32.totalorder %v1583, 1
            %vm1600 = vcmp.eq.s32.totalorder %v1584, 1
            %vm1601 = vcmp.eq.s32.totalorder %v1585, 1
            %vm1602 = vcmp.eq.s32.totalorder %v1586, 1
            %vm1603 = vcmp.eq.s32.totalorder %v1587, 1
            %vm1604 = vcmp.eq.s32.totalorder %v1588, 1
            %vm1605 = vcmp.eq.s32.totalorder %v1589, 1
            %vm1606 = vcmp.eq.s32.totalorder %v1590, 1
            %vm1607 = vcmp.eq.s32.totalorder %v1591, 1
            %vm1608 = vcmp.eq.s32.totalorder %v1592, 1
            %vm1609 = vcmp.eq.s32.totalorder %v1593, 1
            %vm1610 = vcmp.eq.s32.totalorder %v1594, 1
            %vm1611 = vmpackc.low %vm1595, %vm1595
            %vm1612 = vmpackc.low %vm1596, %vm1596
            %vm1613 = vmpackc.low %vm1597, %vm1597
            %vm1614 = vmpackc.low %vm1598, %vm1598
            %vm1615 = vmpackc.low %vm1599, %vm1599
            %vm1616 = vmpackc.low %vm1600, %vm1600
            %vm1617 = vmpackc.low %vm1601, %vm1601
            %vm1618 = vmpackc.low %vm1602, %vm1602
            %vm1619 = vmpackc.low %vm1603, %vm1603
            %vm1620 = vmpackc.low %vm1604, %vm1604
            %vm1621 = vmpackc.low %vm1605, %vm1605
            %vm1622 = vmpackc.low %vm1606, %vm1606
            %vm1623 = vmpackc.low %vm1607, %vm1607
            %vm1624 = vmpackc.low %vm1608, %vm1608
            %vm1625 = vmpackc.low %vm1609, %vm1609
            %vm1626 = vmpackc.low %vm1610, %vm1610
            %v1627 = vsel %vm1611, 65537, 0
            %v1628 = vsel %vm1612, 65537, 0
            %v1629 = vsel %vm1613, 65537, 0
            %v1630 = vsel %vm1614, 65537, 0
            %v1631 = vsel %vm1615, 65537, 0
            %v1632 = vsel %vm1616, 65537, 0
            %v1633 = vsel %vm1617, 65537, 0
            %v1634 = vsel %vm1618, 65537, 0
            %v1635 = vsel %vm1619, 65537, 0
            %v1636 = vsel %vm1620, 65537, 0
            %v1637 = vsel %vm1621, 65537, 0
            %v1638 = vsel %vm1622, 65537, 0
            %v1639 = vsel %vm1623, 65537, 0
            %v1640 = vsel %vm1624, 65537, 0
            %v1641 = vsel %vm1625, 65537, 0
            %v1642 = vsel %vm1626, 65537, 0
            %v1643 = vunpack.c.l.b16 %v1627
            %v1644 = vunpack.c.l.b16 %v1628
            %v1645 = vunpack.c.l.b16 %v1629
            %v1646 = vunpack.c.l.b16 %v1630
            %v1647 = vunpack.c.l.b16 %v1631
            %v1648 = vunpack.c.l.b16 %v1632
            %v1649 = vunpack.c.l.b16 %v1633
            %v1650 = vunpack.c.l.b16 %v1634
            %v1651 = vunpack.c.l.b16 %v1635
            %v1652 = vunpack.c.l.b16 %v1636
            %v1653 = vunpack.c.l.b16 %v1637
            %v1654 = vunpack.c.l.b16 %v1638
            %v1655 = vunpack.c.l.b16 %v1639
            %v1656 = vunpack.c.l.b16 %v1640
            %v1657 = vunpack.c.l.b16 %v1641
            %v1658 = vunpack.c.l.b16 %v1642
            %v1659 = vpack.c.b16 %v1644, %v1643
            %v1660 = vpack.c.b16 %v1646, %v1645
            %v1661 = vpack.c.b16 %v1648, %v1647
            %v1662 = vpack.c.b16 %v1650, %v1649
            %v1663 = vpack.c.b16 %v1652, %v1651
            %v1664 = vpack.c.b16 %v1654, %v1653
            %v1665 = vpack.c.b16 %v1656, %v1655
            %v1666 = vpack.c.b16 %v1658, %v1657
            %vm1667 = vcmp.ne.s16.totalorder %v1659, 0
            %vm1668 = vcmp.ne.s16.totalorder %v1660, 0
            %vm1669 = vcmp.ne.s16.totalorder %v1661, 0
            %vm1670 = vcmp.ne.s16.totalorder %v1662, 0
            %vm1671 = vcmp.ne.s16.totalorder %v1663, 0
            %vm1672 = vcmp.ne.s16.totalorder %v1664, 0
            %vm1673 = vcmp.ne.s16.totalorder %v1665, 0
            %vm1674 = vcmp.ne.s16.totalorder %v1666, 0
            %v1675 = vsel %vm1667, %v1558, 0
            %v1676 = vsel %vm1667, %v1559, 0
            %v1677 = vsel %vm1668, %v1560, 0
            %v1678 = vsel %vm1668, %v1561, 0
            %v1679 = vsel %vm1669, %v1562, 0
            %v1680 = vsel %vm1669, %v1563, 0
            %v1681 = vsel %vm1670, %v1564, 0
            %v1682 = vsel %vm1670, %v1565, 0
            %v1683 = vsel %vm1671, %v1566, 0
            %v1684 = vsel %vm1671, %v1567, 0
            %v1685 = vsel %vm1672, %v1568, 0
            %v1686 = vsel %vm1672, %v1569, 0
            %v1687 = vsel %vm1673, %v1570, 0
            %v1688 = vsel %vm1673, %v1571, 0
            %v1689 = vsel %vm1674, %v1572, 0
            %v1690 = vsel %vm1674, %v1573, 0
            %v1707 = vunpack.c.l.b16 %v1675
            %v1708 = vunpack.c.l.b16 %v1676
            %v1709 = vunpack.c.h.b16 %v1675
            %v1710 = vunpack.c.h.b16 %v1676
            %v1711 = vunpack.c.l.b16 %v1677
            %v1712 = vunpack.c.l.b16 %v1678
            %v1713 = vunpack.c.h.b16 %v1677
            %v1714 = vunpack.c.h.b16 %v1678
            %v1715 = vunpack.c.l.b16 %v1679
            %v1716 = vunpack.c.l.b16 %v1680
            %v1717 = vunpack.c.h.b16 %v1679
            %v1718 = vunpack.c.h.b16 %v1680
            %v1719 = vunpack.c.l.b16 %v1681
            %v1720 = vunpack.c.l.b16 %v1682
            %v1721 = vunpack.c.h.b16 %v1681
            %v1722 = vunpack.c.h.b16 %v1682
            %v1723 = vunpack.c.l.b16 %v1683
            %v1724 = vunpack.c.l.b16 %v1684
            %v1725 = vunpack.c.h.b16 %v1683
            %v1726 = vunpack.c.h.b16 %v1684
            %v1727 = vunpack.c.l.b16 %v1685
            %v1728 = vunpack.c.l.b16 %v1686
            %v1729 = vunpack.c.h.b16 %v1685
            %v1730 = vunpack.c.h.b16 %v1686
            %v1731 = vunpack.c.l.b16 %v1687
            %v1732 = vunpack.c.l.b16 %v1688
            %v1733 = vunpack.c.h.b16 %v1687
            %v1734 = vunpack.c.h.b16 %v1688
            %v1735 = vunpack.c.l.b16 %v1689
            %v1736 = vunpack.c.l.b16 %v1690
            %v1737 = vunpack.c.h.b16 %v1689
            %v1738 = vunpack.c.h.b16 %v1690
            %v1739 = vpack.c.b16 %v1708, %v1707
            %v1740 = vpack.c.b16 %v1710, %v1709
            %v1741 = vpack.c.b16 %v1712, %v1711
            %v1742 = vpack.c.b16 %v1714, %v1713
            %v1743 = vpack.c.b16 %v1716, %v1715
            %v1744 = vpack.c.b16 %v1718, %v1717
            %v1745 = vpack.c.b16 %v1720, %v1719
            %v1746 = vpack.c.b16 %v1722, %v1721
            %v1747 = vpack.c.b16 %v1724, %v1723
            %v1748 = vpack.c.b16 %v1726, %v1725
            %v1749 = vpack.c.b16 %v1728, %v1727
            %v1750 = vpack.c.b16 %v1730, %v1729
            %v1751 = vpack.c.b16 %v1732, %v1731
            %v1752 = vpack.c.b16 %v1734, %v1733
            %v1753 = vpack.c.b16 %v1736, %v1735
            %v1754 = vpack.c.b16 %v1738, %v1737
            %1771 = vst [vmem:[%s398] sm:$0xff] %v1739
            %1772 = vst [vmem:[%s398 + $0x8] sm:$0xff] %v1740
            %1773 = vst [vmem:[%s398 + $0x10] sm:$0xff] %v1741
            %1774 = vst [vmem:[%s398 + $0x18] sm:$0xff] %v1742
            %1775 = vst [vmem:[%s398 + $0x20] sm:$0xff] %v1743
            %1776 = vst [vmem:[%s398 + $0x28] sm:$0xff] %v1744
            %1777 = vst [vmem:[%s398 + $0x30] sm:$0xff] %v1745
            %1778 = vst [vmem:[%s398 + $0x38] sm:$0xff] %v1746
            %1779 = vst [vmem:[%s398 + $0x40] sm:$0xff] %v1747
            %1780 = vst [vmem:[%s398 + $0x48] sm:$0xff] %v1748
            %1781 = vst [vmem:[%s398 + $0x50] sm:$0xff] %v1749
            %1782 = vst [vmem:[%s398 + $0x58] sm:$0xff] %v1750
            %1783 = vst [vmem:[%s398 + $0x60] sm:$0xff] %v1751
            %1784 = vst [vmem:[%s398 + $0x68] sm:$0xff] %v1752
            %1785 = vst [vmem:[%s398 + $0x70] sm:$0xff] %v1753
            %1786 = vst [vmem:[%s398 + $0x78] sm:$0xff] %v1754
          $region64: #{tpu_custom_call.1} parent=59 // pred_fallthru
            _
          %s1787 = sld [smem:[#allocation8 + %s56]]
          %p1788 = scmp.eq.s32.totalorder %s1787, 0
          // Predicated region
          $region65: #{tpu_custom_call.1} parent=59 // pred_check
            %p1789 = pneg %p1788
          $region66: #{tpu_custom_call.1} parent=59 // pred_check_branch
            %1791 = sbr.rel (%p1789) target = $region68
          $region67: #{tpu_custom_call.1} parent=59 // pred_region
            %v1792 = vld [vmem:[%s398] sm:$0xff]
            %v1793 = vld [vmem:[%s398 + $0x8] sm:$0xff]
            %v1794 = vld [vmem:[%s398 + $0x10] sm:$0xff]
            %v1795 = vld [vmem:[%s398 + $0x18] sm:$0xff]
            %v1796 = vld [vmem:[%s398 + $0x20] sm:$0xff]
            %v1797 = vld [vmem:[%s398 + $0x28] sm:$0xff]
            %v1798 = vld [vmem:[%s398 + $0x30] sm:$0xff]
            %v1799 = vld [vmem:[%s398 + $0x38] sm:$0xff]
            %v1800 = vld [vmem:[%s398 + $0x40] sm:$0xff]
            %v1801 = vld [vmem:[%s398 + $0x48] sm:$0xff]
            %v1802 = vld [vmem:[%s398 + $0x50] sm:$0xff]
            %v1803 = vld [vmem:[%s398 + $0x58] sm:$0xff]
            %v1804 = vld [vmem:[%s398 + $0x60] sm:$0xff]
            %v1805 = vld [vmem:[%s398 + $0x68] sm:$0xff]
            %v1806 = vld [vmem:[%s398 + $0x70] sm:$0xff]
            %v1807 = vld [vmem:[%s398 + $0x78] sm:$0xff]
            %v1808 = vsel %vm1510, 1, 0
            %v1809 = vsel %vm1511, 1, 0
            %v1810 = vsel %vm1512, 1, 0
            %v1811 = vsel %vm1513, 1, 0
            %v1812 = vsel %vm1514, 1, 0
            %v1813 = vsel %vm1515, 1, 0
            %v1814 = vsel %vm1516, 1, 0
            %v1815 = vsel %vm1517, 1, 0
            %v1816 = vsel %vm1518, 1, 0
            %v1817 = vsel %vm1519, 1, 0
            %v1818 = vsel %vm1520, 1, 0
            %v1819 = vsel %vm1521, 1, 0
            %v1820 = vsel %vm1522, 1, 0
            %v1821 = vsel %vm1523, 1, 0
            %v1822 = vsel %vm1524, 1, 0
            %v1823 = vsel %vm1525, 1, 0
            %vm1824 = vcmp.eq.s32.totalorder %v1808, 1
            %vm1825 = vcmp.eq.s32.totalorder %v1809, 1
            %vm1826 = vcmp.eq.s32.totalorder %v1810, 1
            %vm1827 = vcmp.eq.s32.totalorder %v1811, 1
            %vm1828 = vcmp.eq.s32.totalorder %v1812, 1
            %vm1829 = vcmp.eq.s32.totalorder %v1813, 1
            %vm1830 = vcmp.eq.s32.totalorder %v1814, 1
            %vm1831 = vcmp.eq.s32.totalorder %v1815, 1
            %vm1832 = vcmp.eq.s32.totalorder %v1816, 1
            %vm1833 = vcmp.eq.s32.totalorder %v1817, 1
            %vm1834 = vcmp.eq.s32.totalorder %v1818, 1
            %vm1835 = vcmp.eq.s32.totalorder %v1819, 1
            %vm1836 = vcmp.eq.s32.totalorder %v1820, 1
            %vm1837 = vcmp.eq.s32.totalorder %v1821, 1
            %vm1838 = vcmp.eq.s32.totalorder %v1822, 1
            %vm1839 = vcmp.eq.s32.totalorder %v1823, 1
            %vm1840 = vmpackc.low %vm1824, %vm1824
            %vm1841 = vmpackc.low %vm1825, %vm1825
            %vm1842 = vmpackc.low %vm1826, %vm1826
            %vm1843 = vmpackc.low %vm1827, %vm1827
            %vm1844 = vmpackc.low %vm1828, %vm1828
            %vm1845 = vmpackc.low %vm1829, %vm1829
            %vm1846 = vmpackc.low %vm1830, %vm1830
            %vm1847 = vmpackc.low %vm1831, %vm1831
            %vm1848 = vmpackc.low %vm1832, %vm1832
            %vm1849 = vmpackc.low %vm1833, %vm1833
            %vm1850 = vmpackc.low %vm1834, %vm1834
            %vm1851 = vmpackc.low %vm1835, %vm1835
            %vm1852 = vmpackc.low %vm1836, %vm1836
            %vm1853 = vmpackc.low %vm1837, %vm1837
            %vm1854 = vmpackc.low %vm1838, %vm1838
            %vm1855 = vmpackc.low %vm1839, %vm1839
            %v1856 = vsel %vm1840, 65537, 0
            %v1857 = vsel %vm1841, 65537, 0
            %v1858 = vsel %vm1842, 65537, 0
            %v1859 = vsel %vm1843, 65537, 0
            %v1860 = vsel %vm1844, 65537, 0
            %v1861 = vsel %vm1845, 65537, 0
            %v1862 = vsel %vm1846, 65537, 0
            %v1863 = vsel %vm1847, 65537, 0
            %v1864 = vsel %vm1848, 65537, 0
            %v1865 = vsel %vm1849, 65537, 0
            %v1866 = vsel %vm1850, 65537, 0
            %v1867 = vsel %vm1851, 65537, 0
            %v1868 = vsel %vm1852, 65537, 0
            %v1869 = vsel %vm1853, 65537, 0
            %v1870 = vsel %vm1854, 65537, 0
            %v1871 = vsel %vm1855, 65537, 0
            %v1872 = vunpack.c.l.b16 %v1856
            %v1873 = vunpack.c.l.b16 %v1857
            %v1874 = vunpack.c.l.b16 %v1858
            %v1875 = vunpack.c.l.b16 %v1859
            %v1876 = vunpack.c.l.b16 %v1860
            %v1877 = vunpack.c.l.b16 %v1861
            %v1878 = vunpack.c.l.b16 %v1862
            %v1879 = vunpack.c.l.b16 %v1863
            %v1880 = vunpack.c.l.b16 %v1864
            %v1881 = vunpack.c.l.b16 %v1865
            %v1882 = vunpack.c.l.b16 %v1866
            %v1883 = vunpack.c.l.b16 %v1867
            %v1884 = vunpack.c.l.b16 %v1868
            %v1885 = vunpack.c.l.b16 %v1869
            %v1886 = vunpack.c.l.b16 %v1870
            %v1887 = vunpack.c.l.b16 %v1871
            %v1888 = vpack.c.b16 %v1873, %v1872
            %v1889 = vpack.c.b16 %v1875, %v1874
            %v1890 = vpack.c.b16 %v1877, %v1876
            %v1891 = vpack.c.b16 %v1879, %v1878
            %v1892 = vpack.c.b16 %v1881, %v1880
            %v1893 = vpack.c.b16 %v1883, %v1882
            %v1894 = vpack.c.b16 %v1885, %v1884
            %v1895 = vpack.c.b16 %v1887, %v1886
            %vm1896 = vcmp.ne.s16.totalorder %v1888, 0
            %vm1897 = vcmp.ne.s16.totalorder %v1889, 0
            %vm1898 = vcmp.ne.s16.totalorder %v1890, 0
            %vm1899 = vcmp.ne.s16.totalorder %v1891, 0
            %vm1900 = vcmp.ne.s16.totalorder %v1892, 0
            %vm1901 = vcmp.ne.s16.totalorder %v1893, 0
            %vm1902 = vcmp.ne.s16.totalorder %v1894, 0
            %vm1903 = vcmp.ne.s16.totalorder %v1895, 0
            %v1920 = vunpack.c.l.b16 %v1792
            %v1921 = vunpack.c.h.b16 %v1792
            %v1922 = vunpack.c.l.b16 %v1793
            %v1923 = vunpack.c.h.b16 %v1793
            %v1924 = vunpack.c.l.b16 %v1794
            %v1925 = vunpack.c.h.b16 %v1794
            %v1926 = vunpack.c.l.b16 %v1795
            %v1927 = vunpack.c.h.b16 %v1795
            %v1928 = vunpack.c.l.b16 %v1796
            %v1929 = vunpack.c.h.b16 %v1796
            %v1930 = vunpack.c.l.b16 %v1797
            %v1931 = vunpack.c.h.b16 %v1797
            %v1932 = vunpack.c.l.b16 %v1798
            %v1933 = vunpack.c.h.b16 %v1798
            %v1934 = vunpack.c.l.b16 %v1799
            %v1935 = vunpack.c.h.b16 %v1799
            %v1936 = vunpack.c.l.b16 %v1800
            %v1937 = vunpack.c.h.b16 %v1800
            %v1938 = vunpack.c.l.b16 %v1801
            %v1939 = vunpack.c.h.b16 %v1801
            %v1940 = vunpack.c.l.b16 %v1802
            %v1941 = vunpack.c.h.b16 %v1802
            %v1942 = vunpack.c.l.b16 %v1803
            %v1943 = vunpack.c.h.b16 %v1803
            %v1944 = vunpack.c.l.b16 %v1804
            %v1945 = vunpack.c.h.b16 %v1804
            %v1946 = vunpack.c.l.b16 %v1805
            %v1947 = vunpack.c.h.b16 %v1805
            %v1948 = vunpack.c.l.b16 %v1806
            %v1949 = vunpack.c.h.b16 %v1806
            %v1950 = vunpack.c.l.b16 %v1807
            %v1951 = vunpack.c.h.b16 %v1807
            %v1952 = vpack.c.b16 %v1922, %v1920
            %v1953 = vpack.c.b16 %v1923, %v1921
            %v1954 = vpack.c.b16 %v1926, %v1924
            %v1955 = vpack.c.b16 %v1927, %v1925
            %v1956 = vpack.c.b16 %v1930, %v1928
            %v1957 = vpack.c.b16 %v1931, %v1929
            %v1958 = vpack.c.b16 %v1934, %v1932
            %v1959 = vpack.c.b16 %v1935, %v1933
            %v1960 = vpack.c.b16 %v1938, %v1936
            %v1961 = vpack.c.b16 %v1939, %v1937
            %v1962 = vpack.c.b16 %v1942, %v1940
            %v1963 = vpack.c.b16 %v1943, %v1941
            %v1964 = vpack.c.b16 %v1946, %v1944
            %v1965 = vpack.c.b16 %v1947, %v1945
            %v1966 = vpack.c.b16 %v1950, %v1948
            %v1967 = vpack.c.b16 %v1951, %v1949
            %v1984 = vsel %vm1896, %v1558, %v1952
            %v1985 = vsel %vm1896, %v1559, %v1953
            %v1986 = vsel %vm1897, %v1560, %v1954
            %v1987 = vsel %vm1897, %v1561, %v1955
            %v1988 = vsel %vm1898, %v1562, %v1956
            %v1989 = vsel %vm1898, %v1563, %v1957
            %v1990 = vsel %vm1899, %v1564, %v1958
            %v1991 = vsel %vm1899, %v1565, %v1959
            %v1992 = vsel %vm1900, %v1566, %v1960
            %v1993 = vsel %vm1900, %v1567, %v1961
            %v1994 = vsel %vm1901, %v1568, %v1962
            %v1995 = vsel %vm1901, %v1569, %v1963
            %v1996 = vsel %vm1902, %v1570, %v1964
            %v1997 = vsel %vm1902, %v1571, %v1965
            %v1998 = vsel %vm1903, %v1572, %v1966
            %v1999 = vsel %vm1903, %v1573, %v1967
            %v2016 = vunpack.c.l.b16 %v1984
            %v2017 = vunpack.c.l.b16 %v1985
            %v2018 = vunpack.c.h.b16 %v1984
            %v2019 = vunpack.c.h.b16 %v1985
            %v2020 = vunpack.c.l.b16 %v1986
            %v2021 = vunpack.c.l.b16 %v1987
            %v2022 = vunpack.c.h.b16 %v1986
            %v2023 = vunpack.c.h.b16 %v1987
            %v2024 = vunpack.c.l.b16 %v1988
            %v2025 = vunpack.c.l.b16 %v1989
            %v2026 = vunpack.c.h.b16 %v1988
            %v2027 = vunpack.c.h.b16 %v1989
            %v2028 = vunpack.c.l.b16 %v1990
            %v2029 = vunpack.c.l.b16 %v1991
            %v2030 = vunpack.c.h.b16 %v1990
            %v2031 = vunpack.c.h.b16 %v1991
            %v2032 = vunpack.c.l.b16 %v1992
            %v2033 = vunpack.c.l.b16 %v1993
            %v2034 = vunpack.c.h.b16 %v1992
            %v2035 = vunpack.c.h.b16 %v1993
            %v2036 = vunpack.c.l.b16 %v1994
            %v2037 = vunpack.c.l.b16 %v1995
            %v2038 = vunpack.c.h.b16 %v1994
            %v2039 = vunpack.c.h.b16 %v1995
            %v2040 = vunpack.c.l.b16 %v1996
            %v2041 = vunpack.c.l.b16 %v1997
            %v2042 = vunpack.c.h.b16 %v1996
            %v2043 = vunpack.c.h.b16 %v1997
            %v2044 = vunpack.c.l.b16 %v1998
            %v2045 = vunpack.c.l.b16 %v1999
            %v2046 = vunpack.c.h.b16 %v1998
            %v2047 = vunpack.c.h.b16 %v1999
            %v2048 = vpack.c.b16 %v2017, %v2016
            %v2049 = vpack.c.b16 %v2019, %v2018
            %v2050 = vpack.c.b16 %v2021, %v2020
            %v2051 = vpack.c.b16 %v2023, %v2022
            %v2052 = vpack.c.b16 %v2025, %v2024
            %v2053 = vpack.c.b16 %v2027, %v2026
            %v2054 = vpack.c.b16 %v2029, %v2028
            %v2055 = vpack.c.b16 %v2031, %v2030
            %v2056 = vpack.c.b16 %v2033, %v2032
            %v2057 = vpack.c.b16 %v2035, %v2034
            %v2058 = vpack.c.b16 %v2037, %v2036
            %v2059 = vpack.c.b16 %v2039, %v2038
            %v2060 = vpack.c.b16 %v2041, %v2040
            %v2061 = vpack.c.b16 %v2043, %v2042
            %v2062 = vpack.c.b16 %v2045, %v2044
            %v2063 = vpack.c.b16 %v2047, %v2046
            %2080 = vst [vmem:[%s398] sm:$0xff] %v2048
            %2081 = vst [vmem:[%s398 + $0x8] sm:$0xff] %v2049
            %2082 = vst [vmem:[%s398 + $0x10] sm:$0xff] %v2050
            %2083 = vst [vmem:[%s398 + $0x18] sm:$0xff] %v2051
            %2084 = vst [vmem:[%s398 + $0x20] sm:$0xff] %v2052
            %2085 = vst [vmem:[%s398 + $0x28] sm:$0xff] %v2053
            %2086 = vst [vmem:[%s398 + $0x30] sm:$0xff] %v2054
            %2087 = vst [vmem:[%s398 + $0x38] sm:$0xff] %v2055
            %2088 = vst [vmem:[%s398 + $0x40] sm:$0xff] %v2056
            %2089 = vst [vmem:[%s398 + $0x48] sm:$0xff] %v2057
            %2090 = vst [vmem:[%s398 + $0x50] sm:$0xff] %v2058
            %2091 = vst [vmem:[%s398 + $0x58] sm:$0xff] %v2059
            %2092 = vst [vmem:[%s398 + $0x60] sm:$0xff] %v2060
            %2093 = vst [vmem:[%s398 + $0x68] sm:$0xff] %v2061
            %2094 = vst [vmem:[%s398 + $0x70] sm:$0xff] %v2062
            %2095 = vst [vmem:[%s398 + $0x78] sm:$0xff] %v2063
          $region68: #{tpu_custom_call.1} parent=59 // pred_fallthru
            _
        $region60: #{tpu_custom_call.1} parent=35 // pred_fallthru
          _
        %s2096 = sand.u32 %s194, 1
        %s2097 = scalar_lea.sflag [#allocation11], %s2096
        %s2098 = sand.u32 %s194, 1
        %s2099 = smul.addr %s2098, 128
        %s2100 = scalar_lea.vmem [#allocation17], %s2099
        // Predicated region
        $region69: #{tpu_custom_call.1} parent=35 // pred_check
          %p2101 = pneg %p204
        $region70: #{tpu_custom_call.1} parent=35 // pred_check_branch
          %2103 = sbr.rel (%p2101) target = $region72
        $region71: #{tpu_custom_call.1} parent=35 // pred_region
          %s2104 = sld [smem:[#allocation4 + %s56]]
          %s2105 = smul.u32 16, %s2104
          %s2107 = ssub.s32 2048, 2048
          %2108 = vsyncadd %s2097, %s2107
          %s2109 = smul.addr %s2105, 2
          %s2110 = smul.addr %s2109, 64
          %s2111 = scalar_lea.hbm %s9, %s2110
          %s2112 = sshll.u32 %s2100, 4
          %s2113 = int_to_ptr.vmem [resolvable:$true] %s2112
          %2118 = dma.vmem_to_hbm [thread:$0]  %s2113, 2048, %s2111, %s2097, 128, 128, 8
        $region72: #{tpu_custom_call.1} parent=35 // pred_fallthru
          _
      $region36: #{tpu_custom_call.1} parent=5 // pred_fallthru
        _
      %p2119 = scmp.le.s32.totalorder 2, %s47
      // Predicated region
      $region73: #{tpu_custom_call.1} parent=5 // pred_check
        %p2120 = pneg %p2119
      $region74: #{tpu_custom_call.1} parent=5 // pred_check_branch
        %2122 = sbr.rel (%p2120) target = $region76
      $region75: #{tpu_custom_call.1} parent=5 // pred_region
        %s2123 = ssub.s32 %s47, 2
        // Predicated region
        $region77: #{tpu_custom_call.1} parent=75 // pred_check
          %p2124 = pneg %p210
        $region78: #{tpu_custom_call.1} parent=75 // pred_check_branch
          %2126 = sbr.rel (%p2124) target = $region80
        $region79: #{tpu_custom_call.1} parent=75 // pred_region
          %s2127 = sand.u32 %s195, 1
          %s2128 = scalar_lea.sflag [#allocation11], %s2127
          %s2129 = sand.u32 %s195, 1
          %s2130 = smul.addr %s2129, 128
          %s2131 = scalar_lea.vmem [#allocation17], %s2130
          %2132 = dma.done %s2128, 2048
        $region80: #{tpu_custom_call.1} parent=75 // pred_fallthru
          _
      $region76: #{tpu_custom_call.1} parent=5 // pred_fallthru
        _
    $region6: #{tpu_custom_call.1} parent=1 // loop_footer
      %s51 = sadd.s32 1, %s47
    $region7: #{tpu_custom_call.1} parent=1 // loop_footer_branch
      %46 = sbr.rel target = $region3
    $region8: #{tpu_custom_call.1} parent=1 // loop_exit
      _
    %2133 = vsyncpa [#allocation10], 1
    %s2134 = scalar_lea.sflag [#allocation10], 1
    %2135 = vsyncpa %s2134, 1
    %2136 = vsyncpa [#allocation13], 1
    %s2137 = scalar_lea.sflag [#allocation13], 1
    %2138 = vsyncpa %s2137, 1
    %2139 = vsyncpa [#allocation16], 1
    %s2140 = scalar_lea.sflag [#allocation16], 1
    %2141 = vsyncpa %s2140, 1
    %2142 = vsyncpa [#allocation11], 1
    %s2143 = scalar_lea.sflag [#allocation11], 1
    %2144 = vsyncpa %s2143, 1

</llo_original>
